<compile_context>
chip_gen: v7x
topology: tpu7x:2x2x1
jax: 0.10.0
libtpu: 0.0.40
codegen_flags: <defaults>
</compile_context>

<pallas_src>
import functools

import jax
import jax.numpy as jnp
from jax import lax
from jax.experimental import pallas as pl
from jax.experimental.pallas import tpu as pltpu

LANE = 128   # TPU lane width; padded feature dims use this
IN_PAD = 8   # padded column count of the packed [state | one-hot] input


# ---------------------------------------------------------------------------
# Kernel
# ---------------------------------------------------------------------------
def _wm_kernel(x_ref, w1_ref, w2h_ref, v_ref, ns_ref, dp_ref, *,
               state_dim, hidden_dim):
    """Fused forward for one batch tile.

    x_ref   : [TB, 8]    f32  packed input: cols 0:SD state, SD:SD+AD one-hot, rest 0
    w1_ref  : [8, 128]   f32  first-layer weights (rows 0:SD+AD real, rest 0)
    w2h_ref : [256, 128] bf16 rows [0,128): W2 (real [H, H/2]);
                              rows [128,256): fused [Ws|Wd] head (real [H/2, SD+1])
    v_ref   : [8, 128]   f32  b1, ln1_g, ln1_b, b2, ln2_g, ln2_b, [bs|bd], pad
    ns_ref  : [TB, SD]   f32  next_state output (exact shape)
    dp_ref  : [TB, 1]    f32  done probability output (exact shape)
    """
    h2_dim = hidden_dim // 2
    eps = jnp.float32(1e-5)

    x = x_ref[...]                               # [TB, 8]
    w1 = w1_ref[...]                             # [8, 128]
    w2 = w2h_ref[0:LANE, :]                      # [128, 128] bf16
    wh = w2h_ref[LANE:2 * LANE, :]               # [128, 128] bf16

    v = v_ref[...]                               # [8, 128]
    b1, g1, be1 = v[0:1, :], v[1:2, :], v[2:3, :]
    b2, g2, be2 = v[3:4, :], v[4:5, :], v[5:6, :]
    bh = v[6:7, :]

    def relu_ln(pre, real_dim, gamma, beta):
        # `pre` is zero in all pad lanes, so the full-lane sum equals the real sum.
        h = jnp.maximum(pre, 0.0)
        lane = lax.broadcasted_iota(jnp.int32, h.shape, 1)
        inv_n = jnp.float32(1.0 / real_dim)
        mu = jnp.sum(h, axis=-1, keepdims=True) * inv_n
        # Two-pass variance E[(x-mu)^2]; mask pad lanes so (0 - mu)^2 doesn't leak in.
        d = jnp.where(lane < real_dim, h - mu, 0.0)
        var = jnp.sum(d * d, axis=-1, keepdims=True) * inv_n
        # gamma/beta are zero in pad lanes -> pad lanes of the output stay zero.
        return d * lax.rsqrt(var + eps) * gamma + beta

    # Shared trunk: Linear -> ReLU -> LayerNorm, twice.
    pre1 = jnp.dot(x, w1, preferred_element_type=jnp.float32) + b1       # [TB, 128]
    h = relu_ln(pre1, hidden_dim, g1, be1)

    pre2 = jnp.dot(h.astype(jnp.bfloat16), w2,
                   preferred_element_type=jnp.float32) + b2              # [TB, 128]
    h = relu_ln(pre2, h2_dim, g2, be2)
    # TODO(synk): Dropout(p=0.05) is identity here (eval/inference mode only).

    # Fused heads: cols 0:SD = delta_state, col SD = done logit, rest zero.
    head = jnp.dot(h.astype(jnp.bfloat16), wh,
                   preferred_element_type=jnp.float32) + bh              # [TB, 128]

    # Exact-shape outputs: residual add + exact sigmoid (all f32).
    ns_ref[...] = x[:, 0:state_dim] + head[:, 0:state_dim]
    logit = head[:, state_dim:state_dim + 1]
    dp_ref[...] = 1.0 / (1.0 + jnp.exp(-logit))


# ---------------------------------------------------------------------------
# Parameter init (PyTorch-Linear-style) and packing into slabs
# ---------------------------------------------------------------------------
def init_params(key, state_dim, action_dim, hidden_dim=64):
    in_dim = state_dim + action_dim
    h2 = hidden_dim // 2
    keys = jax.random.split(key, 8)

    def lin(kw, kb, fan_in, fan_out):
        bound = 1.0 / jnp.sqrt(jnp.float32(fan_in))
        w = jax.random.uniform(kw, (fan_in, fan_out), jnp.float32, -bound, bound)
        b = jax.random.uniform(kb, (1, fan_out), jnp.float32, -bound, bound)
        return w, b

    w1, b1 = lin(keys[0], keys[1], in_dim, hidden_dim)
    w2, b2 = lin(keys[2], keys[3], hidden_dim, h2)
    ws, bs = lin(keys[4], keys[5], h2, state_dim)
    wd, bd = lin(keys[6], keys[7], h2, 1)

    g1 = jnp.ones((1, hidden_dim), jnp.float32)
    be1 = jnp.zeros((1, hidden_dim), jnp.float32)
    g2 = jnp.ones((1, h2), jnp.float32)
    be2 = jnp.zeros((1, h2), jnp.float32)

    return dict(w1=w1, b1=b1, g1=g1, be1=be1,
                w2=w2, b2=b2, g2=g2, be2=be2,
                ws=ws, bs=bs, wd=wd, bd=bd)


def _pad_to(a, rows, cols):
    a = jnp.asarray(a, jnp.float32)
    out = jnp.zeros((rows, cols), jnp.float32)
    return out.at[:a.shape[0], :a.shape[1]].set(a)


def pack_params(params):
    """Pack the 12 parameter arrays into three VMEM-resident slabs."""
    # First-layer weights, f32 (tiny; contraction dim = SD + AD packed cols).
    w1slab = _pad_to(params["w1"], IN_PAD, LANE)                       # f32 [8, 128]

    # Trunk + fused [state|done] head weights, bf16 (native-MXU dtype).
    wh = jnp.concatenate([params["ws"], params["wd"]], axis=1)         # [H/2, SD+1]
    w2hslab = jnp.concatenate([
        _pad_to(params["w2"], LANE, LANE),                             # rows [0,128)
        _pad_to(wh, LANE, LANE),                                       # rows [128,256)
    ], axis=0).astype(jnp.bfloat16)                                    # bf16 [256,128]

    # Bias / LayerNorm vectors, f32.
    bh = jnp.concatenate([params["bs"].reshape(1, -1),
                          params["bd"].reshape(1, -1)], axis=1)        # [1, SD+1]
    rows = [params["b1"], params["g1"], params["be1"],
            params["b2"], params["g2"], params["be2"], bh]
    vslab = jnp.concatenate(
        [_pad_to(jnp.asarray(r).reshape(1, -1), 1, LANE) for r in rows]
        + [jnp.zeros((1, LANE), jnp.float32)], axis=0)                 # f32 [8, 128]
    return w1slab, w2hslab, vslab


# ---------------------------------------------------------------------------
# Wrapper
# ---------------------------------------------------------------------------
def _round_up(x, m):
    return ((x + m - 1) // m) * m


@functools.partial(jax.jit,
                   static_argnames=("state_dim", "action_dim", "hidden_dim",
                                    "num_tiles"))
def one_network_wm_forward(state, action, w1slab, w2hslab, vslab, *,
                           state_dim, action_dim, hidden_dim=64, num_tiles=2):
    """state: f32[B, state_dim]; action: i32[B] -> (next_state, done_prob)."""
    b = state.shape[0]
    # At most `num_tiles` grid steps: num_tiles=2 feeds both v7x TensorCores; on
    # v5e/v6e the second step costs ~0.35 us (vs. 1-step ideal) which is noise.
    tiles = max(1, min(num_tiles, b))
    block_b = _round_up(pl.cdiv(b, tiles), 8)
    bp = block_b * tiles                       # == b whenever b % (8*tiles) == 0

    # Pre-pack [state | one-hot(action) | zeros] into a single f32 [bp, 8] tensor
    # (one activation DMA per tile; no in-kernel one-hot).
    onehot = jax.nn.one_hot(action, action_dim, dtype=jnp.float32)
    x = jnp.concatenate([state.astype(jnp.float32), onehot], axis=1)   # [b, SD+AD]
    x = jnp.pad(x, ((0, bp - b), (0, IN_PAD - (state_dim + action_dim))))

    kernel = functools.partial(_wm_kernel, state_dim=state_dim,
                               hidden_dim=hidden_dim)

    ns, dp = pl.pallas_call(
        kernel,
        out_shape=(jax.ShapeDtypeStruct((bp, state_dim), jnp.float32),
                   jax.ShapeDtypeStruct((bp, 1), jnp.float32)),
        grid=(tiles,),
        in_specs=[
            pl.BlockSpec((block_b, IN_PAD), lambda i: (i, 0)),
            pl.BlockSpec(w1slab.shape, lambda i: (0, 0)),    # VMEM-resident weights
            pl.BlockSpec(w2hslab.shape, lambda i: (0, 0)),   # VMEM-resident weights
            pl.BlockSpec(vslab.shape, lambda i: (0, 0)),     # VMEM-resident vectors
        ],
        out_specs=(pl.BlockSpec((block_b, state_dim), lambda i: (i, 0)),
                   pl.BlockSpec((block_b, 1), lambda i: (i, 0))),
        compiler_params=pltpu.CompilerParams(
            dimension_semantics=("parallel",)),
    )(x, w1slab, w2hslab, vslab)

    if bp != b:                                # no-op slice when b divides evenly
        ns = ns[:b]
        dp = dp[:b]
    return ns, dp


# ---------------------------------------------------------------------------
# Demo / self-check
# ---------------------------------------------------------------------------
if __name__ == "__main__":
    STATE_DIM = 4      # CartPole observation dim
    ACTION_DIM = 2     # CartPole discrete actions
    HIDDEN_DIM = 64
    BATCH = 256        # splits into exactly 2 parallel 128-row tiles (bp == b)

    root = jax.random.PRNGKey(0)
    k_param, k_state, k_action = jax.random.split(root, 3)

    params = init_params(k_param, STATE_DIM, ACTION_DIM, HIDDEN_DIM)
    w1slab, w2hslab, vslab = pack_params(params)

    state = jax.random.normal(k_state, (BATCH, STATE_DIM), jnp.float32)
    action = jax.random.randint(k_action, (BATCH,), 0, ACTION_DIM, jnp.int32)

    next_state, done_prob = one_network_wm_forward(
        state, action, w1slab, w2hslab, vslab,
        state_dim=STATE_DIM, action_dim=ACTION_DIM,
        hidden_dim=HIDDEN_DIM, num_tiles=2)
    jax.block_until_ready((next_state, done_prob))

    # Pure-JAX reference (eval-mode module, f32 weights) for a sanity check.
    def reference(st, ac, p):
        onehot = jax.nn.one_hot(ac, ACTION_DIM, dtype=st.dtype)
        x = jnp.concatenate([st, onehot], axis=1)

        def ln(h, g, be):
            mu = jnp.mean(h, -1, keepdims=True)
            var = jnp.mean((h - mu) ** 2, -1, keepdims=True)
            return (h - mu) / jnp.sqrt(var + 1e-5) * g + be

        h = ln(jnp.maximum(x @ p["w1"] + p["b1"], 0.0), p["g1"], p["be1"])
        h = ln(jnp.maximum(h @ p["w2"] + p["b2"], 0.0), p["g2"], p["be2"])
        ns = st + (h @ p["ws"] + p["bs"])
        dp = jax.nn.sigmoid(h @ p["wd"] + p["bd"])
        return ns, dp

    ref_ns, ref_dp = reference(state, action, params)

    assert next_state.shape == (BATCH, STATE_DIM)
    assert done_prob.shape == (BATCH, 1)
    assert bool(jnp.all(jnp.isfinite(next_state)))
    assert bool(jnp.all((done_prob >= 0.0) & (done_prob <= 1.0)))
    # Tolerance covers bf16 quantization of the two trunk/head matmul weights.
    assert bool(jnp.allclose(next_state, ref_ns, atol=3e-2, rtol=3e-2))
    assert bool(jnp.allclose(done_prob, ref_dp, atol=3e-2))

    print("KERNEL_OK")
</pallas_src>

<mosaic_0001>
module attributes {stable_mosaic.version = 11 : i64} {
  func.func @_wm_kernel(%arg0: i32, %arg1: memref<128x8xf32, #tpu.memory_space<vmem>>, %arg2: memref<8x128xf32, #tpu.memory_space<vmem>>, %arg3: memref<256x128xbf16, #tpu.memory_space<vmem>>, %arg4: memref<8x128xf32, #tpu.memory_space<vmem>>, %arg5: memref<128x4xf32, #tpu.memory_space<vmem>>, %arg6: memref<128x1xf32, #tpu.memory_space<vmem>>) attributes {dimension_semantics = [#tpu.dimension_semantics<parallel>], iteration_bounds = array<i64: 2>, scalar_prefetch = 0 : i64, scratch_operands = 0 : i64, tpu.core_type = #tpu.core_type<tc>, window_params = [{transform_indices = @transform_0, window_bounds = array<i64: 128, 8>}, {pipeline_mode = #tpu.pipeline_mode<synchronous>, transform_indices = @transform_1, window_bounds = array<i64: 8, 128>}, {pipeline_mode = #tpu.pipeline_mode<synchronous>, transform_indices = @transform_2, window_bounds = array<i64: 256, 128>}, {pipeline_mode = #tpu.pipeline_mode<synchronous>, transform_indices = @transform_3, window_bounds = array<i64: 8, 128>}, {transform_indices = @transform_4, window_bounds = array<i64: 128, 4>}, {transform_indices = @transform_5, window_bounds = array<i64: 128, 1>}]} {
    %c0 = arith.constant 0 : index
    %c0_0 = arith.constant 0 : index
    %0 = vector.load %arg1[%c0, %c0_0] : memref<128x8xf32, #tpu.memory_space<vmem>>, vector<128x8xf32>
    %c0_1 = arith.constant 0 : index
    %c0_2 = arith.constant 0 : index
    %1 = vector.load %arg2[%c0_1, %c0_2] : memref<8x128xf32, #tpu.memory_space<vmem>>, vector<8x128xf32>
    %c0_3 = arith.constant 0 : index
    %c0_4 = arith.constant 0 : index
    %2 = vector.load %arg3[%c0_3, %c0_4] : memref<256x128xbf16, #tpu.memory_space<vmem>>, vector<128x128xbf16>
    %c128 = arith.constant 128 : index
    %c0_5 = arith.constant 0 : index
    %3 = vector.load %arg3[%c128, %c0_5] : memref<256x128xbf16, #tpu.memory_space<vmem>>, vector<128x128xbf16>
    %c0_6 = arith.constant 0 : index
    %c0_7 = arith.constant 0 : index
    %4 = vector.load %arg4[%c0_6, %c0_7] : memref<8x128xf32, #tpu.memory_space<vmem>>, vector<8x128xf32>
    %5 = vector.extract_strided_slice %4 {offsets = [0, 0], sizes = [1, 128], strides = [1, 1]} : vector<8x128xf32> to vector<1x128xf32>
    %6 = vector.extract_strided_slice %4 {offsets = [1, 0], sizes = [1, 128], strides = [1, 1]} : vector<8x128xf32> to vector<1x128xf32>
    %7 = vector.extract_strided_slice %4 {offsets = [2, 0], sizes = [1, 128], strides = [1, 1]} : vector<8x128xf32> to vector<1x128xf32>
    %8 = vector.extract_strided_slice %4 {offsets = [3, 0], sizes = [1, 128], strides = [1, 1]} : vector<8x128xf32> to vector<1x128xf32>
    %9 = vector.extract_strided_slice %4 {offsets = [4, 0], sizes = [1, 128], strides = [1, 1]} : vector<8x128xf32> to vector<1x128xf32>
    %10 = vector.extract_strided_slice %4 {offsets = [5, 0], sizes = [1, 128], strides = [1, 1]} : vector<8x128xf32> to vector<1x128xf32>
    %11 = vector.extract_strided_slice %4 {offsets = [6, 0], sizes = [1, 128], strides = [1, 1]} : vector<8x128xf32> to vector<1x128xf32>
    %cst = arith.constant dense<0.000000e+00> : vector<128x128xf32>
    %12 = tpu.matmul %0, %1, %cst {dimension_numbers = #tpu.dot_dimension_numbers<[1], [0], [0], [1], [0, 0, 1, 1], [], []>} : vector<128x8xf32>, vector<8x128xf32>, vector<128x128xf32> -> vector<128x128xf32>
    %13 = vector.broadcast %5 : vector<1x128xf32> to vector<128x128xf32>
    %14 = arith.addf %12, %13 : vector<128x128xf32>
    %cst_8 = arith.constant 0.000000e+00 : f32
    %15 = vector.broadcast %cst_8 : f32 to vector<128x128xf32>
    %16 = arith.maximumf %14, %15 : vector<128x128xf32>
    %17 = tpu.iota {dimensions = array<i32: 1>} : vector<128x128xi32>
    %cst_9 = arith.constant dense<0.000000e+00> : vector<128xf32>
    %18 = vector.multi_reduction <add>, %16, %cst_9 [1] : vector<128x128xf32> to vector<128xf32>
    %19 = vector.shape_cast %18 : vector<128xf32> to vector<128x1xf32>
    %cst_10 = arith.constant 1.562500e-02 : f32
    %20 = vector.broadcast %cst_10 : f32 to vector<128x1xf32>
    %21 = arith.mulf %19, %20 : vector<128x1xf32>
    %c64_i32 = arith.constant 64 : i32
    %22 = vector.broadcast %c64_i32 : i32 to vector<128x128xi32>
    %23 = arith.cmpi slt, %17, %22 : vector<128x128xi32>
    %24 = vector.broadcast %21 : vector<128x1xf32> to vector<128x128xf32>
    %25 = arith.subf %16, %24 : vector<128x128xf32>
    %cst_11 = arith.constant 0.000000e+00 : f32
    %26 = vector.broadcast %cst_11 : f32 to vector<128x128xf32>
    %27 = arith.select %23, %25, %26 : vector<128x128xi1>, vector<128x128xf32>
    %28 = arith.mulf %27, %27 : vector<128x128xf32>
    %cst_12 = arith.constant dense<0.000000e+00> : vector<128xf32>
    %29 = vector.multi_reduction <add>, %28, %cst_12 [1] : vector<128x128xf32> to vector<128xf32>
    %30 = vector.shape_cast %29 : vector<128xf32> to vector<128x1xf32>
    %cst_13 = arith.constant 1.562500e-02 : f32
    %31 = vector.broadcast %cst_13 : f32 to vector<128x1xf32>
    %32 = arith.mulf %30, %31 : vector<128x1xf32>
    %cst_14 = arith.constant 9.99999974E-6 : f32
    %33 = vector.broadcast %cst_14 : f32 to vector<128x1xf32>
    %34 = arith.addf %32, %33 : vector<128x1xf32>
    %35 = math.rsqrt %34 : vector<128x1xf32>
    %36 = vector.broadcast %35 : vector<128x1xf32> to vector<128x128xf32>
    %37 = arith.mulf %27, %36 : vector<128x128xf32>
    %38 = vector.broadcast %6 : vector<1x128xf32> to vector<128x128xf32>
    %39 = arith.mulf %37, %38 : vector<128x128xf32>
    %40 = vector.broadcast %7 : vector<1x128xf32> to vector<128x128xf32>
    %41 = arith.addf %39, %40 : vector<128x128xf32>
    %42 = arith.truncf %41 : vector<128x128xf32> to vector<128x128xbf16>
    %cst_15 = arith.constant dense<0.000000e+00> : vector<128x128xf32>
    %43 = tpu.matmul %42, %2, %cst_15 {dimension_numbers = #tpu.dot_dimension_numbers<[1], [0], [0], [1], [0, 0, 1, 1], [], []>} : vector<128x128xbf16>, vector<128x128xbf16>, vector<128x128xf32> -> vector<128x128xf32>
    %44 = vector.broadcast %8 : vector<1x128xf32> to vector<128x128xf32>
    %45 = arith.addf %43, %44 : vector<128x128xf32>
    %cst_16 = arith.constant 0.000000e+00 : f32
    %46 = vector.broadcast %cst_16 : f32 to vector<128x128xf32>
    %47 = arith.maximumf %45, %46 : vector<128x128xf32>
    %48 = tpu.iota {dimensions = array<i32: 1>} : vector<128x128xi32>
    %cst_17 = arith.constant dense<0.000000e+00> : vector<128xf32>
    %49 = vector.multi_reduction <add>, %47, %cst_17 [1] : vector<128x128xf32> to vector<128xf32>
    %50 = vector.shape_cast %49 : vector<128xf32> to vector<128x1xf32>
    %cst_18 = arith.constant 3.125000e-02 : f32
    %51 = vector.broadcast %cst_18 : f32 to vector<128x1xf32>
    %52 = arith.mulf %50, %51 : vector<128x1xf32>
    %c32_i32 = arith.constant 32 : i32
    %53 = vector.broadcast %c32_i32 : i32 to vector<128x128xi32>
    %54 = arith.cmpi slt, %48, %53 : vector<128x128xi32>
    %55 = vector.broadcast %52 : vector<128x1xf32> to vector<128x128xf32>
    %56 = arith.subf %47, %55 : vector<128x128xf32>
    %cst_19 = arith.constant 0.000000e+00 : f32
    %57 = vector.broadcast %cst_19 : f32 to vector<128x128xf32>
    %58 = arith.select %54, %56, %57 : vector<128x128xi1>, vector<128x128xf32>
    %59 = arith.mulf %58, %58 : vector<128x128xf32>
    %cst_20 = arith.constant dense<0.000000e+00> : vector<128xf32>
    %60 = vector.multi_reduction <add>, %59, %cst_20 [1] : vector<128x128xf32> to vector<128xf32>
    %61 = vector.shape_cast %60 : vector<128xf32> to vector<128x1xf32>
    %cst_21 = arith.constant 3.125000e-02 : f32
    %62 = vector.broadcast %cst_21 : f32 to vector<128x1xf32>
    %63 = arith.mulf %61, %62 : vector<128x1xf32>
    %cst_22 = arith.constant 9.99999974E-6 : f32
    %64 = vector.broadcast %cst_22 : f32 to vector<128x1xf32>
    %65 = arith.addf %63, %64 : vector<128x1xf32>
    %66 = math.rsqrt %65 : vector<128x1xf32>
    %67 = vector.broadcast %66 : vector<128x1xf32> to vector<128x128xf32>
    %68 = arith.mulf %58, %67 : vector<128x128xf32>
    %69 = vector.broadcast %9 : vector<1x128xf32> to vector<128x128xf32>
    %70 = arith.mulf %68, %69 : vector<128x128xf32>
    %71 = vector.broadcast %10 : vector<1x128xf32> to vector<128x128xf32>
    %72 = arith.addf %70, %71 : vector<128x128xf32>
    %73 = arith.truncf %72 : vector<128x128xf32> to vector<128x128xbf16>
    %cst_23 = arith.constant dense<0.000000e+00> : vector<128x128xf32>
    %74 = tpu.matmul %73, %3, %cst_23 {dimension_numbers = #tpu.dot_dimension_numbers<[1], [0], [0], [1], [0, 0, 1, 1], [], []>} : vector<128x128xbf16>, vector<128x128xbf16>, vector<128x128xf32> -> vector<128x128xf32>
    %75 = vector.broadcast %11 : vector<1x128xf32> to vector<128x128xf32>
    %76 = arith.addf %74, %75 : vector<128x128xf32>
    %77 = vector.extract_strided_slice %0 {offsets = [0, 0], sizes = [128, 4], strides = [1, 1]} : vector<128x8xf32> to vector<128x4xf32>
    %78 = vector.extract_strided_slice %76 {offsets = [0, 0], sizes = [128, 4], strides = [1, 1]} : vector<128x128xf32> to vector<128x4xf32>
    %79 = arith.addf %77, %78 : vector<128x4xf32>
    %c0_24 = arith.constant 0 : index
    %c0_25 = arith.constant 0 : index
    %80 = vector.load %arg5[%c0_24, %c0_25] : memref<128x4xf32, #tpu.memory_space<vmem>>, vector<128x4xf32>
    tpu.vector_store %arg5[%c0_24, %c0_25], %79 {strides = array<i32>} : memref<128x4xf32, #tpu.memory_space<vmem>>, vector<128x4xf32>,
    %81 = vector.extract_strided_slice %76 {offsets = [0, 4], sizes = [128, 1], strides = [1, 1]} : vector<128x128xf32> to vector<128x1xf32>
    %cst_26 = arith.constant 0.000000e+00 : f32
    %82 = vector.broadcast %cst_26 : f32 to vector<128x1xf32>
    %83 = arith.subf %82, %81 : vector<128x1xf32>
    %84 = math.exp %83 : vector<128x1xf32>
    %cst_27 = arith.constant 1.000000e+00 : f32
    %85 = vector.broadcast %cst_27 : f32 to vector<128x1xf32>
    %86 = arith.addf %85, %84 : vector<128x1xf32>
    %cst_28 = arith.constant 1.000000e+00 : f32
    %87 = vector.broadcast %cst_28 : f32 to vector<128x1xf32>
    %88 = arith.divf %87, %86 : vector<128x1xf32>
    %c0_29 = arith.constant 0 : index
    %c0_30 = arith.constant 0 : index
    %89 = vector.load %arg6[%c0_29, %c0_30] : memref<128x1xf32, #tpu.memory_space<vmem>>, vector<128x1xf32>
    tpu.vector_store %arg6[%c0_29, %c0_30], %88 {strides = array<i32>} : memref<128x1xf32, #tpu.memory_space<vmem>>, vector<128x1xf32>,
    return
  }
  func.func @transform_0(%arg0: i32) -> (i32, i32) {
    %c0_i32 = arith.constant 0 : i32
    %c0_i32_0 = arith.constant 0 : i32
    return %arg0, %c0_i32 : i32, i32
  }
  func.func @transform_1(%arg0: i32) -> (i32, i32) {
    %c0_i32 = arith.constant 0 : i32
    %c0_i32_0 = arith.constant 0 : i32
    %c0_i32_1 = arith.constant 0 : i32
    return %c0_i32, %c0_i32_0 : i32, i32
  }
  func.func @transform_2(%arg0: i32) -> (i32, i32) {
    %c0_i32 = arith.constant 0 : i32
    %c0_i32_0 = arith.constant 0 : i32
    %c0_i32_1 = arith.constant 0 : i32
    return %c0_i32, %c0_i32_0 : i32, i32
  }
  func.func @transform_3(%arg0: i32) -> (i32, i32) {
    %c0_i32 = arith.constant 0 : i32
    %c0_i32_0 = arith.constant 0 : i32
    %c0_i32_1 = arith.constant 0 : i32
    return %c0_i32, %c0_i32_0 : i32, i32
  }
  func.func @transform_4(%arg0: i32) -> (i32, i32) {
    %c0_i32 = arith.constant 0 : i32
    %c0_i32_0 = arith.constant 0 : i32
    return %arg0, %c0_i32 : i32, i32
  }
  func.func @transform_5(%arg0: i32) -> (i32, i32) {
    %c0_i32 = arith.constant 0 : i32
    %c0_i32_0 = arith.constant 0 : i32
    return %arg0, %c0_i32 : i32, i32
  }
}

</mosaic_0001>

<llo_original>
// kernel: one_network_wm_forward.1
$region0: #{one_network_wm_forward.1}
  #allocation0 [shape = 'u32[]', space=smem, size = 0x4, offset = 0x4, fixed_abs, tag = 'smem constant byte address 0x4 - core index']
  #allocation1 [shape = 'u32[144,128]{1,0:T(1,128)}', space=vmem, size = 0x12000, scoped, tag = 'internal scratch']
  %s0 = inlined_call_operand.vmem [shape: f32[256,8], index: 0, kind: input, shape index: {}]
  %s1 = inlined_call_operand.vmem [shape: f32[8,128], index: 1, kind: input, shape index: {}]
  %s2 = inlined_call_operand.vmem [shape: bf16[256,128], index: 2, kind: input, shape index: {}]
  %s3 = inlined_call_operand.vmem [shape: f32[8,128], index: 3, kind: input, shape index: {}]
  %s4 = inlined_call_operand.vmem [shape: f32[256,4], index: 4, kind: output, shape index: {0}]
  %s5 = inlined_call_operand.vmem [shape: f32[256,1], index: 5, kind: output, shape index: {1}]
  %6 = xla_tuple %s4, %s5
  %s7 = sld [smem:[#allocation0]]
  $region57: #{one_network_wm_forward.1} parent=0
    _
  %s9 = ssub.s32 1, %s7
  %s10 = scalar_select 0, %s9, %s7
  loop: start=0, step=1, limit=4
  $region2: #{one_network_wm_forward.1} parent=0 // loop_pre_header
    _
  $region3: #{one_network_wm_forward.1} parent=0 // loop_header
    %s12 = sphi 0, %s16
    %p13 = scmp.ge.s32.totalorder %s12, 4
    %s22 = sphi 0, %s24
    %s25 = sphi 0, %s22
    %s26 = sphi 0, %s25
    %s42 = sphi 0, %s26
    %s46 = sphi 0, %s46
    %s48 = sphi 0, %s46
    %s49 = sphi 0, %s48
    %s63 = sphi 0, %s49
    %s67 = sphi 0, %s67
    %s69 = sphi 0, %s67
    %s70 = sphi 0, %s69
    %s84 = sphi 0, %s70
    %s88 = sphi 0, %s88
    %s90 = sphi 0, %s88
    %s91 = sphi 0, %s90
    %s105 = sphi 0, %s91
    %s111 = sphi 0, %s113
    %s114 = sphi 0, %s111
    %s115 = sphi 0, %s114
    %s131 = sphi 0, %s115
    %s137 = sphi 0, %s139
    %s140 = sphi 0, %s137
    %s141 = sphi 0, %s140
    %s157 = sphi 0, %s141
  $region4: #{one_network_wm_forward.1} parent=0 // loop_header_branch
    %15 = sbr.rel (%p13) target = $region8
  $region5: #{one_network_wm_forward.1} parent=0 // loop_body
    %s17 = ssub.s32 %s12, 1
    %s18 = ssub.s32 %s12, 2
    %s19 = sadd.s32 %s12, 1
    %s20 = ssub.s32 %s12, %s19
    %p21 = scmp.eq.s32.totalorder %s20, 0
    %s23 = sadd.s32 %s22, 1
    %s24 = scalar_select %p21, %s22, %s23
    %p27 = pneg %p21
    %p28 = scmp.eq.s32.totalorder %s12, 1
    %p29 = por %p27, %p28
    %p30 = scmp.ne.s32.totalorder %s22, %s25
    %p31 = scmp.eq.s32.totalorder %s12, 0
    %p32 = por %p30, %p31
    %p33 = scmp.ne.s32.totalorder %s22, %s25
    %p34 = scmp.eq.s32.totalorder %s17, 1
    %p35 = por %p33, %p34
    %p36 = scmp.ne.s32.totalorder %s25, %s26
    %p37 = scmp.eq.s32.totalorder %s17, 0
    %p38 = por %p36, %p37
    %p39 = scmp.ne.s32.totalorder %s25, %s26
    %p40 = scmp.eq.s32.totalorder %s18, 1
    %p41 = por %p39, %p40
    %p43 = scmp.ne.s32.totalorder %s26, %s42
    %p44 = scmp.eq.s32.totalorder %s18, 0
    %p45 = por %p43, %p44
    %s47 = sadd.s32 %s46, 1
    %p50 = scmp.eq.s32.totalorder %s12, 1
    %p51 = scmp.ne.s32.totalorder %s46, %s48
    %p52 = scmp.eq.s32.totalorder %s12, 0
    %p53 = por %p51, %p52
    %p54 = scmp.ne.s32.totalorder %s46, %s48
    %p55 = scmp.eq.s32.totalorder %s17, 1
    %p56 = por %p54, %p55
    %p57 = scmp.ne.s32.totalorder %s48, %s49
    %p58 = scmp.eq.s32.totalorder %s17, 0
    %p59 = por %p57, %p58
    %p60 = scmp.ne.s32.totalorder %s48, %s49
    %p61 = scmp.eq.s32.totalorder %s18, 1
    %p62 = por %p60, %p61
    %p64 = scmp.ne.s32.totalorder %s49, %s63
    %p65 = scmp.eq.s32.totalorder %s18, 0
    %p66 = por %p64, %p65
    %s68 = sadd.s32 %s67, 1
    %p71 = scmp.eq.s32.totalorder %s12, 1
    %p72 = scmp.ne.s32.totalorder %s67, %s69
    %p73 = scmp.eq.s32.totalorder %s12, 0
    %p74 = por %p72, %p73
    %p75 = scmp.ne.s32.totalorder %s67, %s69
    %p76 = scmp.eq.s32.totalorder %s17, 1
    %p77 = por %p75, %p76
    %p78 = scmp.ne.s32.totalorder %s69, %s70
    %p79 = scmp.eq.s32.totalorder %s17, 0
    %p80 = por %p78, %p79
    %p81 = scmp.ne.s32.totalorder %s69, %s70
    %p82 = scmp.eq.s32.totalorder %s18, 1
    %p83 = por %p81, %p82
    %p85 = scmp.ne.s32.totalorder %s70, %s84
    %p86 = scmp.eq.s32.totalorder %s18, 0
    %p87 = por %p85, %p86
    %s89 = sadd.s32 %s88, 1
    %p92 = scmp.eq.s32.totalorder %s12, 1
    %p93 = scmp.ne.s32.totalorder %s88, %s90
    %p94 = scmp.eq.s32.totalorder %s12, 0
    %p95 = por %p93, %p94
    %p96 = scmp.ne.s32.totalorder %s88, %s90
    %p97 = scmp.eq.s32.totalorder %s17, 1
    %p98 = por %p96, %p97
    %p99 = scmp.ne.s32.totalorder %s90, %s91
    %p100 = scmp.eq.s32.totalorder %s17, 0
    %p101 = por %p99, %p100
    %p102 = scmp.ne.s32.totalorder %s90, %s91
    %p103 = scmp.eq.s32.totalorder %s18, 1
    %p104 = por %p102, %p103
    %p106 = scmp.ne.s32.totalorder %s91, %s105
    %p107 = scmp.eq.s32.totalorder %s18, 0
    %p108 = por %p106, %p107
    %s109 = ssub.s32 %s12, %s19
    %p110 = scmp.eq.s32.totalorder %s109, 0
    %s112 = sadd.s32 %s111, 1
    %s113 = scalar_select %p110, %s111, %s112
    %p116 = pneg %p110
    %p117 = scmp.eq.s32.totalorder %s12, 1
    %p118 = por %p116, %p117
    %p119 = scmp.ne.s32.totalorder %s111, %s114
    %p120 = scmp.eq.s32.totalorder %s12, 0
    %p121 = por %p119, %p120
    %p122 = scmp.ne.s32.totalorder %s111, %s114
    %p123 = scmp.eq.s32.totalorder %s17, 1
    %p124 = por %p122, %p123
    %p125 = scmp.ne.s32.totalorder %s114, %s115
    %p126 = scmp.eq.s32.totalorder %s17, 0
    %p127 = por %p125, %p126
    %p128 = scmp.ne.s32.totalorder %s114, %s115
    %p129 = scmp.eq.s32.totalorder %s18, 1
    %p130 = por %p128, %p129
    %p132 = scmp.ne.s32.totalorder %s115, %s131
    %p133 = scmp.eq.s32.totalorder %s18, 0
    %p134 = por %p132, %p133
    %s135 = ssub.s32 %s12, %s19
    %p136 = scmp.eq.s32.totalorder %s135, 0
    %s138 = sadd.s32 %s137, 1
    %s139 = scalar_select %p136, %s137, %s138
    %p142 = pneg %p136
    %p143 = scmp.eq.s32.totalorder %s12, 1
    %p144 = por %p142, %p143
    %p145 = scmp.ne.s32.totalorder %s137, %s140
    %p146 = scmp.eq.s32.totalorder %s12, 0
    %p147 = por %p145, %p146
    %p148 = scmp.ne.s32.totalorder %s137, %s140
    %p149 = scmp.eq.s32.totalorder %s17, 1
    %p150 = por %p148, %p149
    %p151 = scmp.ne.s32.totalorder %s140, %s141
    %p152 = scmp.eq.s32.totalorder %s17, 0
    %p153 = por %p151, %p152
    %p154 = scmp.ne.s32.totalorder %s140, %s141
    %p155 = scmp.eq.s32.totalorder %s18, 1
    %p156 = por %p154, %p155
    %p158 = scmp.ne.s32.totalorder %s141, %s157
    %p159 = scmp.eq.s32.totalorder %s18, 0
    %p160 = por %p158, %p159
    %p161 = scmp.le.s32.totalorder 1, %s12
    %p162 = scmp.lt.s32.totalorder %s12, 3
    %p163 = pnand %p161, %p162
    %p164 = pneg %p163
    // Predicated region
    $region9: #{one_network_wm_forward.1} parent=5 // pred_check
      _
    $region10: #{one_network_wm_forward.1} parent=5 // pred_check_branch
      %166 = sbr.rel (%p163) target = $region12
    $region11: #{one_network_wm_forward.1} parent=5 // pred_region
      %s167 = ssub.s32 %s12, 1
      // Predicated region
      $region13: #{one_network_wm_forward.1} parent=11 // pred_check
        %p168 = pneg %p59
      $region14: #{one_network_wm_forward.1} parent=11 // pred_check_branch
        %170 = sbr.rel (%p168) target = $region16
      $region15: #{one_network_wm_forward.1} parent=11 // pred_region
        _
      $region16: #{one_network_wm_forward.1} parent=11 // pred_fallthru
        _
      // Predicated region
      $region17: #{one_network_wm_forward.1} parent=11 // pred_check
        %p171 = pneg %p80
      $region18: #{one_network_wm_forward.1} parent=11 // pred_check_branch
        %173 = sbr.rel (%p171) target = $region20
      $region19: #{one_network_wm_forward.1} parent=11 // pred_region
        _
      $region20: #{one_network_wm_forward.1} parent=11 // pred_fallthru
        _
      // Predicated region
      $region21: #{one_network_wm_forward.1} parent=11 // pred_check
        %p174 = pneg %p101
      $region22: #{one_network_wm_forward.1} parent=11 // pred_check_branch
        %176 = sbr.rel (%p174) target = $region24
      $region23: #{one_network_wm_forward.1} parent=11 // pred_region
        _
      $region24: #{one_network_wm_forward.1} parent=11 // pred_fallthru
        _
    $region12: #{one_network_wm_forward.1} parent=5 // pred_fallthru
      _
    %p177 = scmp.lt.s32.totalorder %s12, 2
    // Predicated region
    $region25: #{one_network_wm_forward.1} parent=5 // pred_check
      %p178 = pneg %p177
    $region26: #{one_network_wm_forward.1} parent=5 // pred_check_branch
      %180 = sbr.rel (%p178) target = $region28
    $region27: #{one_network_wm_forward.1} parent=5 // pred_region
      // Predicated region
      $region29: #{one_network_wm_forward.1} parent=27 // pred_check
        %p181 = pneg %p32
      $region30: #{one_network_wm_forward.1} parent=27 // pred_check_branch
        %183 = sbr.rel (%p181) target = $region32
      $region31: #{one_network_wm_forward.1} parent=27 // pred_region
        %s184 = smul.u32 16, %s12
        %p185 = scmp.lt.s32.totalorder %s184, 31
        %s186 = scalar_select %p185, %s184, 31
        %s187 = smul.addr %s186, 8
        %s188 = scalar_lea.vmem %s0, %s187
        %s189 = smul.u32 16, %s12
      $region32: #{one_network_wm_forward.1} parent=27 // pred_fallthru
        _
    $region28: #{one_network_wm_forward.1} parent=5 // pred_fallthru
      _
    %p190 = scmp.le.s32.totalorder 1, %s12
    %p191 = scmp.lt.s32.totalorder %s12, 3
    %p192 = pnand %p190, %p191
    %p193 = pneg %p192
    // Predicated region
    $region33: #{one_network_wm_forward.1} parent=5 // pred_check
      _
    $region34: #{one_network_wm_forward.1} parent=5 // pred_check_branch
      %195 = sbr.rel (%p192) target = $region36
    $region35: #{one_network_wm_forward.1} parent=5 // pred_region
      %s196 = ssub.s32 %s12, 1
      %s197 = smul.u32 16, %s17
      %p198 = scmp.lt.s32.totalorder %s197, 31
      %s199 = scalar_select %p198, %s197, 31
      %s200 = smul.addr %s199, 8
      %s201 = scalar_lea.vmem %s0, %s200
      %p202 = pneg %p38
      %p203 = pneg %p35
      %p204 = pneg %p59
      %p205 = pneg %p56
      %p206 = pneg %p80
      %p207 = pneg %p77
      %p208 = pneg %p101
      %p209 = pneg %p98
      %p210 = pneg %p127
      %p211 = pneg %p124
      %s212 = smul.u32 16, %s17
      %p213 = scmp.lt.s32.totalorder %s212, 31
      %s214 = scalar_select %p213, %s212, 31
      %s215 = smul.addr %s214, 8
      %s216 = scalar_lea.vmem %s4, %s215
      %p217 = pneg %p153
      %p218 = pneg %p150
      %s219 = smul.u32 16, %s17
      %p220 = scmp.lt.s32.totalorder %s219, 31
      %s221 = scalar_select %p220, %s219, 31
      %s222 = smul.addr %s221, 8
      %s223 = scalar_lea.vmem %s5, %s222
      %s224 = smul.u32 16, %s17
      %p225 = scmp.lt.s32.totalorder %s224, 31
      %s226 = scalar_select %p225, %s224, 31
      %s227 = smul.addr %s226, 8
      %s228 = scalar_lea.vmem %s0, %s227
      %s229 = smul.u32 16, %s17
      %s230 = smul.u32 16, %s17
      %p231 = scmp.lt.s32.totalorder %s230, 31
      %s232 = scalar_select %p231, %s230, 31
      %s233 = smul.addr %s232, 8
      %s234 = scalar_lea.vmem %s4, %s233
      %s235 = smul.u32 16, %s17
      %s236 = smul.u32 16, %s17
      %p237 = scmp.lt.s32.totalorder %s236, 31
      %s238 = scalar_select %p237, %s236, 31
      %s239 = smul.addr %s238, 8
      %s240 = scalar_lea.vmem %s5, %s239
      %s241 = smul.u32 16, %s17
      %v243 = vld [vmem:[%s228] sm:$0xff]
      %v244 = vld [vmem:[%s228 + $0x8] sm:$0xff]
      %v245 = vld [vmem:[%s228 + $0x10] sm:$0xff]
      %v246 = vld [vmem:[%s228 + $0x18] sm:$0xff]
      %v247 = vld [vmem:[%s228 + $0x20] sm:$0xff]
      %v248 = vld [vmem:[%s228 + $0x28] sm:$0xff]
      %v249 = vld [vmem:[%s228 + $0x30] sm:$0xff]
      %v250 = vld [vmem:[%s228 + $0x38] sm:$0xff]
      %v251 = vld [vmem:[%s228 + $0x40] sm:$0xff]
      %v252 = vld [vmem:[%s228 + $0x48] sm:$0xff]
      %v253 = vld [vmem:[%s228 + $0x50] sm:$0xff]
      %v254 = vld [vmem:[%s228 + $0x58] sm:$0xff]
      %v255 = vld [vmem:[%s228 + $0x60] sm:$0xff]
      %v256 = vld [vmem:[%s228 + $0x68] sm:$0xff]
      %v257 = vld [vmem:[%s228 + $0x70] sm:$0xff]
      %v258 = vld [vmem:[%s228 + $0x78] sm:$0xff]
      %v259 = vld [vmem:[%s1] sm:$0xff]
      %v260 = vld [vmem:[%s2] sm:$0xf]
      %v261 = vld [vmem:[%s2 + $0x4] sm:$0xf]
      %v262 = vld [vmem:[%s2 + $0x8] sm:$0xf]
      %v263 = vld [vmem:[%s2 + $0xc] sm:$0xf]
      %v264 = vld [vmem:[%s2 + $0x10] sm:$0xf]
      %v265 = vld [vmem:[%s2 + $0x14] sm:$0xf]
      %v266 = vld [vmem:[%s2 + $0x18] sm:$0xf]
      %v267 = vld [vmem:[%s2 + $0x1c] sm:$0xf]
      %v268 = vld [vmem:[%s2 + $0x20] sm:$0xf]
      %v269 = vld [vmem:[%s2 + $0x24] sm:$0xf]
      %v270 = vld [vmem:[%s2 + $0x28] sm:$0xf]
      %v271 = vld [vmem:[%s2 + $0x2c] sm:$0xf]
      %v272 = vld [vmem:[%s2 + $0x30] sm:$0xf]
      %v273 = vld [vmem:[%s2 + $0x34] sm:$0xf]
      %v274 = vld [vmem:[%s2 + $0x38] sm:$0xf]
      %v275 = vld [vmem:[%s2 + $0x3c] sm:$0xf]
      %v276 = vld [vmem:[%s2 + $0x40] sm:$0xf]
      %v277 = vld [vmem:[%s2 + $0x44] sm:$0xf]
      %v278 = vld [vmem:[%s2 + $0x48] sm:$0xf]
      %v279 = vld [vmem:[%s2 + $0x4c] sm:$0xf]
      %v280 = vld [vmem:[%s2 + $0x50] sm:$0xf]
      %v281 = vld [vmem:[%s2 + $0x54] sm:$0xf]
      %v282 = vld [vmem:[%s2 + $0x58] sm:$0xf]
      %v283 = vld [vmem:[%s2 + $0x5c] sm:$0xf]
      %v284 = vld [vmem:[%s2 + $0x60] sm:$0xf]
      %v285 = vld [vmem:[%s2 + $0x64] sm:$0xf]
      %v286 = vld [vmem:[%s2 + $0x68] sm:$0xf]
      %v287 = vld [vmem:[%s2 + $0x6c] sm:$0xf]
      %v288 = vld [vmem:[%s2 + $0x70] sm:$0xf]
      %v289 = vld [vmem:[%s2 + $0x74] sm:$0xf]
      %v290 = vld [vmem:[%s2 + $0x78] sm:$0xf]
      %v291 = vld [vmem:[%s2 + $0x7c] sm:$0xf]
      %v292 = vld [vmem:[%s3] sm:$0xff]
      %v293 = vlaneseq
      %v294 = vshrl.u32 %v293, 7
      %v295 = vsub.s32 0, %v294
      %v296 = vrot.slane %v292, %v295
      %vm297 = vcmask 64512
      %v299 = vsel %vm297, %v243, 0
      %v302 = vsel %vm297, %v244, 0
      %v305 = vsel %vm297, %v245, 0
      %v308 = vsel %vm297, %v246, 0
      %v311 = vsel %vm297, %v247, 0
      %v314 = vsel %vm297, %v248, 0
      %v317 = vsel %vm297, %v249, 0
      %v320 = vsel %vm297, %v250, 0
      %v323 = vsel %vm297, %v251, 0
      %v326 = vsel %vm297, %v252, 0
      %v329 = vsel %vm297, %v253, 0
      %v332 = vsel %vm297, %v254, 0
      %v335 = vsel %vm297, %v255, 0
      %v338 = vsel %vm297, %v256, 0
      %v341 = vsel %vm297, %v257, 0
      %v344 = vsel %vm297, %v258, 0
      %346 = vmatprep.subr.mxu0 0.0
      %347 = vmatpush1.msra.mxu0 %v259
      %348 = vmatprep.subr.mxu0 0.0
      %349 = vmatpush1.msra.mxu0 0.0
      %350 = vmatprep.subr.mxu0 0.0
      %351 = vmatpush1.msra.mxu0 0.0
      %352 = vmatprep.subr.mxu0 0.0
      %353 = vmatpush1.msra.mxu0 0.0
      %354 = vmatprep.subr.mxu0 0.0
      %355 = vmatpush1.msra.mxu0 0.0
      %356 = vmatprep.subr.mxu0 0.0
      %357 = vmatpush1.msra.mxu0 0.0
      %358 = vmatprep.subr.mxu0 0.0
      %359 = vmatpush1.msra.mxu0 0.0
      %360 = vmatprep.subr.mxu0 0.0
      %361 = vmatpush1.msra.mxu0 0.0
      %362 = vmatprep.subr.mxu0 0.0
      %363 = vmatpush1.msra.mxu0 0.0
      %364 = vmatprep.subr.mxu0 0.0
      %365 = vmatpush1.msra.mxu0 0.0
      %366 = vmatprep.subr.mxu0 0.0
      %367 = vmatpush1.msra.mxu0 0.0
      %368 = vmatprep.subr.mxu0 0.0
      %369 = vmatpush1.msra.mxu0 0.0
      %370 = vmatprep.subr.mxu0 0.0
      %371 = vmatpush1.msra.mxu0 0.0
      %372 = vmatprep.subr.mxu0 0.0
      %373 = vmatpush1.msra.mxu0 0.0
      %374 = vmatprep.subr.mxu0 0.0
      %375 = vmatpush1.msra.mxu0 0.0
      %376 = vmatprep.subr.mxu0 0.0
      %377 = vmatpush1.msra.mxu0 0.0
      %378 = vmatprep.subr.mxu0 0.0
      %379 = vmatpush1.msra.mxu0 0.0
      %380 = vmatprep.subr.mxu0 0.0
      %381 = vmatpush1.msra.mxu0 0.0
      %382 = vmatprep.subr.mxu0 0.0
      %383 = vmatpush1.msra.mxu0 0.0
      %384 = vmatprep.subr.mxu0 0.0
      %385 = vmatpush1.msra.mxu0 0.0
      %386 = vmatprep.subr.mxu0 0.0
      %387 = vmatpush1.msra.mxu0 0.0
      %388 = vmatprep.subr.mxu0 0.0
      %389 = vmatpush1.msra.mxu0 0.0
      %390 = vmatprep.subr.mxu0 0.0
      %391 = vmatpush1.msra.mxu0 0.0
      %392 = vmatprep.subr.mxu0 0.0
      %393 = vmatpush1.msra.mxu0 0.0
      %394 = vmatprep.subr.mxu0 0.0
      %395 = vmatpush1.msra.mxu0 0.0
      %396 = vmatprep.subr.mxu0 0.0
      %397 = vmatpush1.msra.mxu0 0.0
      %398 = vmatprep.subr.mxu0 0.0
      %399 = vmatpush1.msra.mxu0 0.0
      %400 = vmatprep.subr.mxu0 0.0
      %401 = vmatpush1.msra.mxu0 0.0
      %402 = vmatprep.subr.mxu0 0.0
      %403 = vmatpush1.msra.mxu0 0.0
      %404 = vmatprep.subr.mxu0 0.0
      %405 = vmatpush1.msra.mxu0 0.0
      %406 = vmatprep.subr.mxu0 0.0
      %407 = vmatpush1.msra.mxu0 0.0
      %408 = vmatprep.subr.mxu0 0.0
      %409 = vmatpush1.msra.mxu0 0.0
      %410 = vmatprep.mubr.f32.mxu0 0.0
      %411 = vmatmul.mubr.f32.gmra.mrb[0].mxu0 %v299
      %v412 = vpop.f32.mrb[0].mxu0
      %v413 = vadd.f32 %v296, %v412
      %v414 = vpop.f32.mrb[0].mxu0
      %415 = vmatprep.mubr.f32.mxu0 0.0
      %416 = vmatmul.mubr.f32.gmra.mrb[0].mxu0 %v302
      %v417 = vpop.f32.mrb[0].mxu0
      %v418 = vadd.f32 %v296, %v417
      %v419 = vpop.f32.mrb[0].mxu0
      %420 = vmatprep.mubr.f32.mxu0 0.0
      %421 = vmatmul.mubr.f32.gmra.mrb[0].mxu0 %v305
      %v422 = vpop.f32.mrb[0].mxu0
      %v423 = vadd.f32 %v296, %v422
      %v424 = vpop.f32.mrb[0].mxu0
      %425 = vmatprep.mubr.f32.mxu0 0.0
      %426 = vmatmul.mubr.f32.gmra.mrb[0].mxu0 %v308
      %v427 = vpop.f32.mrb[0].mxu0
      %v428 = vadd.f32 %v296, %v427
      %v429 = vpop.f32.mrb[0].mxu0
      %430 = vmatprep.mubr.f32.mxu0 0.0
      %431 = vmatmul.mubr.f32.gmra.mrb[0].mxu0 %v311
      %v432 = vpop.f32.mrb[0].mxu0
      %v433 = vadd.f32 %v296, %v432
      %v434 = vpop.f32.mrb[0].mxu0
      %435 = vmatprep.mubr.f32.mxu0 0.0
      %436 = vmatmul.mubr.f32.gmra.mrb[0].mxu0 %v314
      %v437 = vpop.f32.mrb[0].mxu0
      %v438 = vadd.f32 %v296, %v437
      %v439 = vpop.f32.mrb[0].mxu0
      %440 = vmatprep.mubr.f32.mxu0 0.0
      %441 = vmatmul.mubr.f32.gmra.mrb[0].mxu0 %v317
      %v442 = vpop.f32.mrb[0].mxu0
      %v443 = vadd.f32 %v296, %v442
      %v444 = vpop.f32.mrb[0].mxu0
      %445 = vmatprep.mubr.f32.mxu0 0.0
      %446 = vmatmul.mubr.f32.gmra.mrb[0].mxu0 %v320
      %v447 = vpop.f32.mrb[0].mxu0
      %v448 = vadd.f32 %v296, %v447
      %v449 = vpop.f32.mrb[0].mxu0
      %450 = vmatprep.mubr.f32.mxu0 0.0
      %451 = vmatmul.mubr.f32.gmra.mrb[0].mxu0 %v323
      %v452 = vpop.f32.mrb[0].mxu0
      %v453 = vadd.f32 %v296, %v452
      %v454 = vpop.f32.mrb[0].mxu0
      %455 = vmatprep.mubr.f32.mxu0 0.0
      %456 = vmatmul.mubr.f32.gmra.mrb[0].mxu0 %v326
      %v457 = vpop.f32.mrb[0].mxu0
      %v458 = vadd.f32 %v296, %v457
      %v459 = vpop.f32.mrb[0].mxu0
      %460 = vmatprep.mubr.f32.mxu0 0.0
      %461 = vmatmul.mubr.f32.gmra.mrb[0].mxu0 %v329
      %v462 = vpop.f32.mrb[0].mxu0
      %v463 = vadd.f32 %v296, %v462
      %v464 = vpop.f32.mrb[0].mxu0
      %465 = vmatprep.mubr.f32.mxu0 0.0
      %466 = vmatmul.mubr.f32.gmra.mrb[0].mxu0 %v332
      %v467 = vpop.f32.mrb[0].mxu0
      %v468 = vadd.f32 %v296, %v467
      %v469 = vpop.f32.mrb[0].mxu0
      %470 = vmatprep.mubr.f32.mxu0 0.0
      %471 = vmatmul.mubr.f32.gmra.mrb[0].mxu0 %v335
      %v472 = vpop.f32.mrb[0].mxu0
      %v473 = vadd.f32 %v296, %v472
      %v474 = vpop.f32.mrb[0].mxu0
      %475 = vmatprep.mubr.f32.mxu0 0.0
      %476 = vmatmul.mubr.f32.gmra.mrb[0].mxu0 %v338
      %v477 = vpop.f32.mrb[0].mxu0
      %v478 = vadd.f32 %v296, %v477
      %v479 = vpop.f32.mrb[0].mxu0
      %480 = vmatprep.mubr.f32.mxu0 0.0
      %481 = vmatmul.mubr.f32.gmra.mrb[0].mxu0 %v341
      %v482 = vpop.f32.mrb[0].mxu0
      %v483 = vadd.f32 %v296, %v482
      %v484 = vpop.f32.mrb[0].mxu0
      %485 = vmatprep.mubr.f32.mxu0 0.0
      %486 = vmatmul.mubr.f32.gmra.mrb[0].mxu0 %v344
      %v487 = vpop.f32.mrb[0].mxu0
      %v488 = vadd.f32 %v296, %v487
      %v489 = vpop.f32.mrb[0].mxu0
      %490 = vdwg.mxu0
      %v491 = vmax.f32 %v413, 0.0
      %v492 = vmax.f32 %v418, 0.0
      %v493 = vmax.f32 %v423, 0.0
      %v494 = vmax.f32 %v428, 0.0
      %v495 = vmax.f32 %v433, 0.0
      %v496 = vmax.f32 %v438, 0.0
      %v497 = vmax.f32 %v443, 0.0
      %v498 = vmax.f32 %v448, 0.0
      %v499 = vmax.f32 %v453, 0.0
      %v500 = vmax.f32 %v458, 0.0
      %v501 = vmax.f32 %v463, 0.0
      %v502 = vmax.f32 %v468, 0.0
      %v503 = vmax.f32 %v473, 0.0
      %v504 = vmax.f32 %v478, 0.0
      %v505 = vmax.f32 %v483, 0.0
      %v506 = vmax.f32 %v488, 0.0
      %v507 = vlaneseq
      %v508 = vand.u32 %v507, 127
      %509 = vadd.xlane.f32.xlu0 %v491
      %v510 = vpop.xlane.xlu0 %509
      %511 = vadd.xlane.f32.xlu0 %v492
      %v512 = vpop.xlane.xlu0 %511
      %513 = vadd.xlane.f32.xlu0 %v493
      %v514 = vpop.xlane.xlu0 %513
      %515 = vadd.xlane.f32.xlu0 %v494
      %v516 = vpop.xlane.xlu0 %515
      %517 = vadd.xlane.f32.xlu0 %v495
      %v518 = vpop.xlane.xlu0 %517
      %519 = vadd.xlane.f32.xlu0 %v496
      %v520 = vpop.xlane.xlu0 %519
      %521 = vadd.xlane.f32.xlu0 %v497
      %v522 = vpop.xlane.xlu0 %521
      %523 = vadd.xlane.f32.xlu0 %v498
      %v524 = vpop.xlane.xlu0 %523
      %525 = vadd.xlane.f32.xlu0 %v499
      %v526 = vpop.xlane.xlu0 %525
      %527 = vadd.xlane.f32.xlu0 %v500
      %v528 = vpop.xlane.xlu0 %527
      %529 = vadd.xlane.f32.xlu0 %v501
      %v530 = vpop.xlane.xlu0 %529
      %531 = vadd.xlane.f32.xlu0 %v502
      %v532 = vpop.xlane.xlu0 %531
      %533 = vadd.xlane.f32.xlu0 %v503
      %v534 = vpop.xlane.xlu0 %533
      %535 = vadd.xlane.f32.xlu0 %v504
      %v536 = vpop.xlane.xlu0 %535
      %537 = vadd.xlane.f32.xlu0 %v505
      %v538 = vpop.xlane.xlu0 %537
      %539 = vadd.xlane.f32.xlu0 %v506
      %v540 = vpop.xlane.xlu0 %539
      %v541 = vmul.f32 %v510, 0.015625
      %v542 = vmul.f32 %v512, 0.015625
      %v543 = vmul.f32 %v514, 0.015625
      %v544 = vmul.f32 %v516, 0.015625
      %v545 = vmul.f32 %v518, 0.015625
      %v546 = vmul.f32 %v520, 0.015625
      %v547 = vmul.f32 %v522, 0.015625
      %v548 = vmul.f32 %v524, 0.015625
      %v549 = vmul.f32 %v526, 0.015625
      %v550 = vmul.f32 %v528, 0.015625
      %v551 = vmul.f32 %v530, 0.015625
      %v552 = vmul.f32 %v532, 0.015625
      %v553 = vmul.f32 %v534, 0.015625
      %v554 = vmul.f32 %v536, 0.015625
      %v555 = vmul.f32 %v538, 0.015625
      %v556 = vmul.f32 %v540, 0.015625
      %vm557 = vcmp.lt.s32.totalorder %v508, 64
      %v558 = vsub.f32 %v491, %v541
      %v559 = vsub.f32 %v492, %v542
      %v560 = vsub.f32 %v493, %v543
      %v561 = vsub.f32 %v494, %v544
      %v562 = vsub.f32 %v495, %v545
      %v563 = vsub.f32 %v496, %v546
      %v564 = vsub.f32 %v497, %v547
      %v565 = vsub.f32 %v498, %v548
      %v566 = vsub.f32 %v499, %v549
      %v567 = vsub.f32 %v500, %v550
      %v568 = vsub.f32 %v501, %v551
      %v569 = vsub.f32 %v502, %v552
      %v570 = vsub.f32 %v503, %v553
      %v571 = vsub.f32 %v504, %v554
      %v572 = vsub.f32 %v505, %v555
      %v573 = vsub.f32 %v506, %v556
      %v574 = vsel %vm557, %v558, 0.0
      %v575 = vsel %vm557, %v559, 0.0
      %v576 = vsel %vm557, %v560, 0.0
      %v577 = vsel %vm557, %v561, 0.0
      %v578 = vsel %vm557, %v562, 0.0
      %v579 = vsel %vm557, %v563, 0.0
      %v580 = vsel %vm557, %v564, 0.0
      %v581 = vsel %vm557, %v565, 0.0
      %v582 = vsel %vm557, %v566, 0.0
      %v583 = vsel %vm557, %v567, 0.0
      %v584 = vsel %vm557, %v568, 0.0
      %v585 = vsel %vm557, %v569, 0.0
      %v586 = vsel %vm557, %v570, 0.0
      %v587 = vsel %vm557, %v571, 0.0
      %v588 = vsel %vm557, %v572, 0.0
      %v589 = vsel %vm557, %v573, 0.0
      %v590 = vmul.f32 %v574, %v574
      %v591 = vmul.f32 %v575, %v575
      %v592 = vmul.f32 %v576, %v576
      %v593 = vmul.f32 %v577, %v577
      %v594 = vmul.f32 %v578, %v578
      %v595 = vmul.f32 %v579, %v579
      %v596 = vmul.f32 %v580, %v580
      %v597 = vmul.f32 %v581, %v581
      %v598 = vmul.f32 %v582, %v582
      %v599 = vmul.f32 %v583, %v583
      %v600 = vmul.f32 %v584, %v584
      %v601 = vmul.f32 %v585, %v585
      %v602 = vmul.f32 %v586, %v586
      %v603 = vmul.f32 %v587, %v587
      %v604 = vmul.f32 %v588, %v588
      %v605 = vmul.f32 %v589, %v589
      %606 = vadd.xlane.f32.xlu0 %v590
      %v607 = vpop.xlane.xlu0 %606
      %608 = vadd.xlane.f32.xlu0 %v591
      %v609 = vpop.xlane.xlu0 %608
      %610 = vadd.xlane.f32.xlu0 %v592
      %v611 = vpop.xlane.xlu0 %610
      %612 = vadd.xlane.f32.xlu0 %v593
      %v613 = vpop.xlane.xlu0 %612
      %614 = vadd.xlane.f32.xlu0 %v594
      %v615 = vpop.xlane.xlu0 %614
      %616 = vadd.xlane.f32.xlu0 %v595
      %v617 = vpop.xlane.xlu0 %616
      %618 = vadd.xlane.f32.xlu0 %v596
      %v619 = vpop.xlane.xlu0 %618
      %620 = vadd.xlane.f32.xlu0 %v597
      %v621 = vpop.xlane.xlu0 %620
      %622 = vadd.xlane.f32.xlu0 %v598
      %v623 = vpop.xlane.xlu0 %622
      %624 = vadd.xlane.f32.xlu0 %v599
      %v625 = vpop.xlane.xlu0 %624
      %626 = vadd.xlane.f32.xlu0 %v600
      %v627 = vpop.xlane.xlu0 %626
      %628 = vadd.xlane.f32.xlu0 %v601
      %v629 = vpop.xlane.xlu0 %628
      %630 = vadd.xlane.f32.xlu0 %v602
      %v631 = vpop.xlane.xlu0 %630
      %632 = vadd.xlane.f32.xlu0 %v603
      %v633 = vpop.xlane.xlu0 %632
      %634 = vadd.xlane.f32.xlu0 %v604
      %v635 = vpop.xlane.xlu0 %634
      %636 = vadd.xlane.f32.xlu0 %v605
      %v637 = vpop.xlane.xlu0 %636
      %v638 = vmul.f32 %v607, 0.015625
      %v639 = vmul.f32 %v609, 0.015625
      %v640 = vmul.f32 %v611, 0.015625
      %v641 = vmul.f32 %v613, 0.015625
      %v642 = vmul.f32 %v615, 0.015625
      %v643 = vmul.f32 %v617, 0.015625
      %v644 = vmul.f32 %v619, 0.015625
      %v645 = vmul.f32 %v621, 0.015625
      %v646 = vmul.f32 %v623, 0.015625
      %v647 = vmul.f32 %v625, 0.015625
      %v648 = vmul.f32 %v627, 0.015625
      %v649 = vmul.f32 %v629, 0.015625
      %v650 = vmul.f32 %v631, 0.015625
      %v651 = vmul.f32 %v633, 0.015625
      %v652 = vmul.f32 %v635, 0.015625
      %v653 = vmul.f32 %v637, 0.015625
      %v654 = vadd.f32 %v638, 1e-05
      %v655 = vadd.f32 %v639, 1e-05
      %v656 = vadd.f32 %v640, 1e-05
      %v657 = vadd.f32 %v641, 1e-05
      %v658 = vadd.f32 %v642, 1e-05
      %v659 = vadd.f32 %v643, 1e-05
      %v660 = vadd.f32 %v644, 1e-05
      %v661 = vadd.f32 %v645, 1e-05
      %v662 = vadd.f32 %v646, 1e-05
      %v663 = vadd.f32 %v647, 1e-05
      %v664 = vadd.f32 %v648, 1e-05
      %v665 = vadd.f32 %v649, 1e-05
      %v666 = vadd.f32 %v650, 1e-05
      %v667 = vadd.f32 %v651, 1e-05
      %v668 = vadd.f32 %v652, 1e-05
      %v669 = vadd.f32 %v653, 1e-05
      %v670 = vrsqrt.pop %v654
      %v671 = vrsqrt.pop %v655
      %v672 = vrsqrt.pop %v656
      %v673 = vrsqrt.pop %v657
      %v674 = vrsqrt.pop %v658
      %v675 = vrsqrt.pop %v659
      %v676 = vrsqrt.pop %v660
      %v677 = vrsqrt.pop %v661
      %v678 = vrsqrt.pop %v662
      %v679 = vrsqrt.pop %v663
      %v680 = vrsqrt.pop %v664
      %v681 = vrsqrt.pop %v665
      %v682 = vrsqrt.pop %v666
      %v683 = vrsqrt.pop %v667
      %v684 = vrsqrt.pop %v668
      %v685 = vrsqrt.pop %v669
      %v686 = vmul.f32 %v574, %v670
      %v687 = vmul.f32 %v575, %v671
      %v688 = vmul.f32 %v576, %v672
      %v689 = vmul.f32 %v577, %v673
      %v690 = vmul.f32 %v578, %v674
      %v691 = vmul.f32 %v579, %v675
      %v692 = vmul.f32 %v580, %v676
      %v693 = vmul.f32 %v581, %v677
      %v694 = vmul.f32 %v582, %v678
      %v695 = vmul.f32 %v583, %v679
      %v696 = vmul.f32 %v584, %v680
      %v697 = vmul.f32 %v585, %v681
      %v698 = vmul.f32 %v586, %v682
      %v699 = vmul.f32 %v587, %v683
      %v700 = vmul.f32 %v588, %v684
      %v701 = vmul.f32 %v589, %v685
      %v702 = vlaneseq
      %v703 = vshrl.u32 %v702, 7
      %v704 = vsub.s32 1, %v703
      %v705 = vrot.slane %v292, %v704
      %v706 = vmul.f32 %v686, %v705
      %v707 = vmul.f32 %v687, %v705
      %v708 = vmul.f32 %v688, %v705
      %v709 = vmul.f32 %v689, %v705
      %v710 = vmul.f32 %v690, %v705
      %v711 = vmul.f32 %v691, %v705
      %v712 = vmul.f32 %v692, %v705
      %v713 = vmul.f32 %v693, %v705
      %v714 = vmul.f32 %v694, %v705
      %v715 = vmul.f32 %v695, %v705
      %v716 = vmul.f32 %v696, %v705
      %v717 = vmul.f32 %v697, %v705
      %v718 = vmul.f32 %v698, %v705
      %v719 = vmul.f32 %v699, %v705
      %v720 = vmul.f32 %v700, %v705
      %v721 = vmul.f32 %v701, %v705
      %v722 = vlaneseq
      %v723 = vshrl.u32 %v722, 7
      %v724 = vsub.s32 2, %v723
      %v725 = vrot.slane %v292, %v724
      %v726 = vadd.f32 %v706, %v725
      %v727 = vadd.f32 %v707, %v725
      %v728 = vadd.f32 %v708, %v725
      %v729 = vadd.f32 %v709, %v725
      %v730 = vadd.f32 %v710, %v725
      %v731 = vadd.f32 %v711, %v725
      %v732 = vadd.f32 %v712, %v725
      %v733 = vadd.f32 %v713, %v725
      %v734 = vadd.f32 %v714, %v725
      %v735 = vadd.f32 %v715, %v725
      %v736 = vadd.f32 %v716, %v725
      %v737 = vadd.f32 %v717, %v725
      %v738 = vadd.f32 %v718, %v725
      %v739 = vadd.f32 %v719, %v725
      %v740 = vadd.f32 %v720, %v725
      %v741 = vadd.f32 %v721, %v725
      %v742 = vpack.c.bf16 %v727, %v726
      %v743 = vpack.c.bf16 %v729, %v728
      %v744 = vpack.c.bf16 %v731, %v730
      %v745 = vpack.c.bf16 %v733, %v732
      %v746 = vpack.c.bf16 %v735, %v734
      %v747 = vpack.c.bf16 %v737, %v736
      %v748 = vpack.c.bf16 %v739, %v738
      %v749 = vpack.c.bf16 %v741, %v740
      %v750 = vlaneseq
      %v751 = vshrl.u32 %v750, 7
      %v752 = vsub.s32 3, %v751
      %v753 = vrot.slane %v292, %v752
      %v770 = vunpack.c.l.b16 %v260
      %v771 = vunpack.c.l.b16 %v261
      %v772 = vunpack.c.l.b16 %v262
      %v773 = vunpack.c.l.b16 %v263
      %v774 = vunpack.c.l.b16 %v264
      %v775 = vunpack.c.l.b16 %v265
      %v776 = vunpack.c.l.b16 %v266
      %v777 = vunpack.c.l.b16 %v267
      %v778 = vunpack.c.l.b16 %v268
      %v779 = vunpack.c.l.b16 %v269
      %v780 = vunpack.c.l.b16 %v270
      %v781 = vunpack.c.l.b16 %v271
      %v782 = vunpack.c.l.b16 %v272
      %v783 = vunpack.c.l.b16 %v273
      %v784 = vunpack.c.l.b16 %v274
      %v785 = vunpack.c.l.b16 %v275
      %v786 = vpack.c.b16 %v771, %v770
      %v787 = vpack.c.b16 %v773, %v772
      %v788 = vpack.c.b16 %v775, %v774
      %v789 = vpack.c.b16 %v777, %v776
      %v790 = vpack.c.b16 %v779, %v778
      %v791 = vpack.c.b16 %v781, %v780
      %v792 = vpack.c.b16 %v783, %v782
      %v793 = vpack.c.b16 %v785, %v784
      %802 = vmatprep.subr.bf16.mxu0 0
      %803 = vmatpush1.bf16.msra.mxu0 %v786
      %804 = vmatprep.subr.bf16.mxu0 0
      %805 = vmatpush1.bf16.msra.mxu0 %v787
      %806 = vmatprep.subr.bf16.mxu0 0
      %807 = vmatpush1.bf16.msra.mxu0 %v788
      %808 = vmatprep.subr.bf16.mxu0 0
      %809 = vmatpush1.bf16.msra.mxu0 %v789
      %810 = vmatprep.subr.bf16.mxu0 0
      %811 = vmatpush1.bf16.msra.mxu0 %v790
      %812 = vmatprep.subr.bf16.mxu0 0
      %813 = vmatpush1.bf16.msra.mxu0 %v791
      %814 = vmatprep.subr.bf16.mxu0 0
      %815 = vmatpush1.bf16.msra.mxu0 %v792
      %816 = vmatprep.subr.bf16.mxu0 0
      %817 = vmatpush1.bf16.msra.mxu0 %v793
      %818 = vmatprep.subr.bf16.mxu0 0
      %819 = vmatpush1.bf16.msra.mxu0 0
      %820 = vmatprep.subr.bf16.mxu0 0
      %821 = vmatpush1.bf16.msra.mxu0 0
      %822 = vmatprep.subr.bf16.mxu0 0
      %823 = vmatpush1.bf16.msra.mxu0 0
      %824 = vmatprep.subr.bf16.mxu0 0
      %825 = vmatpush1.bf16.msra.mxu0 0
      %826 = vmatprep.subr.bf16.mxu0 0
      %827 = vmatpush1.bf16.msra.mxu0 0
      %828 = vmatprep.subr.bf16.mxu0 0
      %829 = vmatpush1.bf16.msra.mxu0 0
      %830 = vmatprep.subr.bf16.mxu0 0
      %831 = vmatpush1.bf16.msra.mxu0 0
      %832 = vmatprep.subr.bf16.mxu0 0
      %833 = vmatpush1.bf16.msra.mxu0 0
      %834 = vmatprep.mubr.bf16.mxu0 0
      %835 = vmatmul.mubr.bf16.gmra.mrb[0].mxu0 %v742
      %v836 = vpop.f32.mrb[0].mxu0
      %v837 = vadd.f32 %v753, %v836
      %v838 = vpop.f32.mrb[0].mxu0
      %v839 = vpop.f32.mrb[0].mxu0
      %v840 = vadd.f32 %v753, %v839
      %v841 = vpop.f32.mrb[0].mxu0
      %842 = vmatprep.mubr.bf16.mxu0 0
      %843 = vmatmul.mubr.bf16.gmra.mrb[0].mxu0 %v743
      %v844 = vpop.f32.mrb[0].mxu0
      %v845 = vadd.f32 %v753, %v844
      %v846 = vpop.f32.mrb[0].mxu0
      %v847 = vpop.f32.mrb[0].mxu0
      %v848 = vadd.f32 %v753, %v847
      %v849 = vpop.f32.mrb[0].mxu0
      %850 = vmatprep.mubr.bf16.mxu0 0
      %851 = vmatmul.mubr.bf16.gmra.mrb[0].mxu0 %v744
      %v852 = vpop.f32.mrb[0].mxu0
      %v853 = vadd.f32 %v753, %v852
      %v854 = vpop.f32.mrb[0].mxu0
      %v855 = vpop.f32.mrb[0].mxu0
      %v856 = vadd.f32 %v753, %v855
      %v857 = vpop.f32.mrb[0].mxu0
      %858 = vmatprep.mubr.bf16.mxu0 0
      %859 = vmatmul.mubr.bf16.gmra.mrb[0].mxu0 %v745
      %v860 = vpop.f32.mrb[0].mxu0
      %v861 = vadd.f32 %v753, %v860
      %v862 = vpop.f32.mrb[0].mxu0
      %v863 = vpop.f32.mrb[0].mxu0
      %v864 = vadd.f32 %v753, %v863
      %v865 = vpop.f32.mrb[0].mxu0
      %866 = vmatprep.mubr.bf16.mxu0 0
      %867 = vmatmul.mubr.bf16.gmra.mrb[0].mxu0 %v746
      %v868 = vpop.f32.mrb[0].mxu0
      %v869 = vadd.f32 %v753, %v868
      %v870 = vpop.f32.mrb[0].mxu0
      %v871 = vpop.f32.mrb[0].mxu0
      %v872 = vadd.f32 %v753, %v871
      %v873 = vpop.f32.mrb[0].mxu0
      %874 = vmatprep.mubr.bf16.mxu0 0
      %875 = vmatmul.mubr.bf16.gmra.mrb[0].mxu0 %v747
      %v876 = vpop.f32.mrb[0].mxu0
      %v877 = vadd.f32 %v753, %v876
      %v878 = vpop.f32.mrb[0].mxu0
      %v879 = vpop.f32.mrb[0].mxu0
      %v880 = vadd.f32 %v753, %v879
      %v881 = vpop.f32.mrb[0].mxu0
      %882 = vmatprep.mubr.bf16.mxu0 0
      %883 = vmatmul.mubr.bf16.gmra.mrb[0].mxu0 %v748
      %v884 = vpop.f32.mrb[0].mxu0
      %v885 = vadd.f32 %v753, %v884
      %v886 = vpop.f32.mrb[0].mxu0
      %v887 = vpop.f32.mrb[0].mxu0
      %v888 = vadd.f32 %v753, %v887
      %v889 = vpop.f32.mrb[0].mxu0
      %890 = vmatprep.mubr.bf16.mxu0 0
      %891 = vmatmul.mubr.bf16.gmra.mrb[0].mxu0 %v749
      %v892 = vpop.f32.mrb[0].mxu0
      %v893 = vadd.f32 %v753, %v892
      %v894 = vpop.f32.mrb[0].mxu0
      %v895 = vpop.f32.mrb[0].mxu0
      %v896 = vadd.f32 %v753, %v895
      %v897 = vpop.f32.mrb[0].mxu0
      %898 = vdwg.mxu0
      %v899 = vmax.f32 %v837, 0.0
      %v900 = vmax.f32 %v840, 0.0
      %v901 = vmax.f32 %v845, 0.0
      %v902 = vmax.f32 %v848, 0.0
      %v903 = vmax.f32 %v853, 0.0
      %v904 = vmax.f32 %v856, 0.0
      %v905 = vmax.f32 %v861, 0.0
      %v906 = vmax.f32 %v864, 0.0
      %v907 = vmax.f32 %v869, 0.0
      %v908 = vmax.f32 %v872, 0.0
      %v909 = vmax.f32 %v877, 0.0
      %v910 = vmax.f32 %v880, 0.0
      %v911 = vmax.f32 %v885, 0.0
      %v912 = vmax.f32 %v888, 0.0
      %v913 = vmax.f32 %v893, 0.0
      %v914 = vmax.f32 %v896, 0.0
      %915 = vadd.xlane.f32.xlu0 %v899
      %v916 = vpop.xlane.xlu0 %915
      %917 = vadd.xlane.f32.xlu0 %v900
      %v918 = vpop.xlane.xlu0 %917
      %919 = vadd.xlane.f32.xlu0 %v901
      %v920 = vpop.xlane.xlu0 %919
      %921 = vadd.xlane.f32.xlu0 %v902
      %v922 = vpop.xlane.xlu0 %921
      %923 = vadd.xlane.f32.xlu0 %v903
      %v924 = vpop.xlane.xlu0 %923
      %925 = vadd.xlane.f32.xlu0 %v904
      %v926 = vpop.xlane.xlu0 %925
      %927 = vadd.xlane.f32.xlu0 %v905
      %v928 = vpop.xlane.xlu0 %927
      %929 = vadd.xlane.f32.xlu0 %v906
      %v930 = vpop.xlane.xlu0 %929
      %931 = vadd.xlane.f32.xlu0 %v907
      %v932 = vpop.xlane.xlu0 %931
      %933 = vadd.xlane.f32.xlu0 %v908
      %v934 = vpop.xlane.xlu0 %933
      %935 = vadd.xlane.f32.xlu0 %v909
      %v936 = vpop.xlane.xlu0 %935
      %937 = vadd.xlane.f32.xlu0 %v910
      %v938 = vpop.xlane.xlu0 %937
      %939 = vadd.xlane.f32.xlu0 %v911
      %v940 = vpop.xlane.xlu0 %939
      %941 = vadd.xlane.f32.xlu0 %v912
      %v942 = vpop.xlane.xlu0 %941
      %943 = vadd.xlane.f32.xlu0 %v913
      %v944 = vpop.xlane.xlu0 %943
      %945 = vadd.xlane.f32.xlu0 %v914
      %v946 = vpop.xlane.xlu0 %945
      %v947 = vmul.f32 %v916, 0.03125
      %v948 = vmul.f32 %v918, 0.03125
      %v949 = vmul.f32 %v920, 0.03125
      %v950 = vmul.f32 %v922, 0.03125
      %v951 = vmul.f32 %v924, 0.03125
      %v952 = vmul.f32 %v926, 0.03125
      %v953 = vmul.f32 %v928, 0.03125
      %v954 = vmul.f32 %v930, 0.03125
      %v955 = vmul.f32 %v932, 0.03125
      %v956 = vmul.f32 %v934, 0.03125
      %v957 = vmul.f32 %v936, 0.03125
      %v958 = vmul.f32 %v938, 0.03125
      %v959 = vmul.f32 %v940, 0.03125
      %v960 = vmul.f32 %v942, 0.03125
      %v961 = vmul.f32 %v944, 0.03125
      %v962 = vmul.f32 %v946, 0.03125
      %vm963 = vcmp.lt.s32.totalorder %v508, 32
      %v964 = vsub.f32 %v899, %v947
      %v965 = vsub.f32 %v900, %v948
      %v966 = vsub.f32 %v901, %v949
      %v967 = vsub.f32 %v902, %v950
      %v968 = vsub.f32 %v903, %v951
      %v969 = vsub.f32 %v904, %v952
      %v970 = vsub.f32 %v905, %v953
      %v971 = vsub.f32 %v906, %v954
      %v972 = vsub.f32 %v907, %v955
      %v973 = vsub.f32 %v908, %v956
      %v974 = vsub.f32 %v909, %v957
      %v975 = vsub.f32 %v910, %v958
      %v976 = vsub.f32 %v911, %v959
      %v977 = vsub.f32 %v912, %v960
      %v978 = vsub.f32 %v913, %v961
      %v979 = vsub.f32 %v914, %v962
      %v980 = vsel %vm963, %v964, 0.0
      %v981 = vsel %vm963, %v965, 0.0
      %v982 = vsel %vm963, %v966, 0.0
      %v983 = vsel %vm963, %v967, 0.0
      %v984 = vsel %vm963, %v968, 0.0
      %v985 = vsel %vm963, %v969, 0.0
      %v986 = vsel %vm963, %v970, 0.0
      %v987 = vsel %vm963, %v971, 0.0
      %v988 = vsel %vm963, %v972, 0.0
      %v989 = vsel %vm963, %v973, 0.0
      %v990 = vsel %vm963, %v974, 0.0
      %v991 = vsel %vm963, %v975, 0.0
      %v992 = vsel %vm963, %v976, 0.0
      %v993 = vsel %vm963, %v977, 0.0
      %v994 = vsel %vm963, %v978, 0.0
      %v995 = vsel %vm963, %v979, 0.0
      %v996 = vmul.f32 %v980, %v980
      %v997 = vmul.f32 %v981, %v981
      %v998 = vmul.f32 %v982, %v982
      %v999 = vmul.f32 %v983, %v983
      %v1000 = vmul.f32 %v984, %v984
      %v1001 = vmul.f32 %v985, %v985
      %v1002 = vmul.f32 %v986, %v986
      %v1003 = vmul.f32 %v987, %v987
      %v1004 = vmul.f32 %v988, %v988
      %v1005 = vmul.f32 %v989, %v989
      %v1006 = vmul.f32 %v990, %v990
      %v1007 = vmul.f32 %v991, %v991
      %v1008 = vmul.f32 %v992, %v992
      %v1009 = vmul.f32 %v993, %v993
      %v1010 = vmul.f32 %v994, %v994
      %v1011 = vmul.f32 %v995, %v995
      %1012 = vadd.xlane.f32.xlu0 %v996
      %v1013 = vpop.xlane.xlu0 %1012
      %1014 = vadd.xlane.f32.xlu0 %v997
      %v1015 = vpop.xlane.xlu0 %1014
      %1016 = vadd.xlane.f32.xlu0 %v998
      %v1017 = vpop.xlane.xlu0 %1016
      %1018 = vadd.xlane.f32.xlu0 %v999
      %v1019 = vpop.xlane.xlu0 %1018
      %1020 = vadd.xlane.f32.xlu0 %v1000
      %v1021 = vpop.xlane.xlu0 %1020
      %1022 = vadd.xlane.f32.xlu0 %v1001
      %v1023 = vpop.xlane.xlu0 %1022
      %1024 = vadd.xlane.f32.xlu0 %v1002
      %v1025 = vpop.xlane.xlu0 %1024
      %1026 = vadd.xlane.f32.xlu0 %v1003
      %v1027 = vpop.xlane.xlu0 %1026
      %1028 = vadd.xlane.f32.xlu0 %v1004
      %v1029 = vpop.xlane.xlu0 %1028
      %1030 = vadd.xlane.f32.xlu0 %v1005
      %v1031 = vpop.xlane.xlu0 %1030
      %1032 = vadd.xlane.f32.xlu0 %v1006
      %v1033 = vpop.xlane.xlu0 %1032
      %1034 = vadd.xlane.f32.xlu0 %v1007
      %v1035 = vpop.xlane.xlu0 %1034
      %1036 = vadd.xlane.f32.xlu0 %v1008
      %v1037 = vpop.xlane.xlu0 %1036
      %1038 = vadd.xlane.f32.xlu0 %v1009
      %v1039 = vpop.xlane.xlu0 %1038
      %1040 = vadd.xlane.f32.xlu0 %v1010
      %v1041 = vpop.xlane.xlu0 %1040
      %1042 = vadd.xlane.f32.xlu0 %v1011
      %v1043 = vpop.xlane.xlu0 %1042
      %v1044 = vmul.f32 %v1013, 0.03125
      %v1045 = vmul.f32 %v1015, 0.03125
      %v1046 = vmul.f32 %v1017, 0.03125
      %v1047 = vmul.f32 %v1019, 0.03125
      %v1048 = vmul.f32 %v1021, 0.03125
      %v1049 = vmul.f32 %v1023, 0.03125
      %v1050 = vmul.f32 %v1025, 0.03125
      %v1051 = vmul.f32 %v1027, 0.03125
      %v1052 = vmul.f32 %v1029, 0.03125
      %v1053 = vmul.f32 %v1031, 0.03125
      %v1054 = vmul.f32 %v1033, 0.03125
      %v1055 = vmul.f32 %v1035, 0.03125
      %v1056 = vmul.f32 %v1037, 0.03125
      %v1057 = vmul.f32 %v1039, 0.03125
      %v1058 = vmul.f32 %v1041, 0.03125
      %v1059 = vmul.f32 %v1043, 0.03125
      %v1060 = vadd.f32 %v1044, 1e-05
      %v1061 = vadd.f32 %v1045, 1e-05
      %v1062 = vadd.f32 %v1046, 1e-05
      %v1063 = vadd.f32 %v1047, 1e-05
      %v1064 = vadd.f32 %v1048, 1e-05
      %v1065 = vadd.f32 %v1049, 1e-05
      %v1066 = vadd.f32 %v1050, 1e-05
      %v1067 = vadd.f32 %v1051, 1e-05
      %v1068 = vadd.f32 %v1052, 1e-05
      %v1069 = vadd.f32 %v1053, 1e-05
      %v1070 = vadd.f32 %v1054, 1e-05
      %v1071 = vadd.f32 %v1055, 1e-05
      %v1072 = vadd.f32 %v1056, 1e-05
      %v1073 = vadd.f32 %v1057, 1e-05
      %v1074 = vadd.f32 %v1058, 1e-05
      %v1075 = vadd.f32 %v1059, 1e-05
      %v1076 = vrsqrt.pop %v1060
      %v1077 = vrsqrt.pop %v1061
      %v1078 = vrsqrt.pop %v1062
      %v1079 = vrsqrt.pop %v1063
      %v1080 = vrsqrt.pop %v1064
      %v1081 = vrsqrt.pop %v1065
      %v1082 = vrsqrt.pop %v1066
      %v1083 = vrsqrt.pop %v1067
      %v1084 = vrsqrt.pop %v1068
      %v1085 = vrsqrt.pop %v1069
      %v1086 = vrsqrt.pop %v1070
      %v1087 = vrsqrt.pop %v1071
      %v1088 = vrsqrt.pop %v1072
      %v1089 = vrsqrt.pop %v1073
      %v1090 = vrsqrt.pop %v1074
      %v1091 = vrsqrt.pop %v1075
      %v1092 = vmul.f32 %v980, %v1076
      %v1093 = vmul.f32 %v981, %v1077
      %v1094 = vmul.f32 %v982, %v1078
      %v1095 = vmul.f32 %v983, %v1079
      %v1096 = vmul.f32 %v984, %v1080
      %v1097 = vmul.f32 %v985, %v1081
      %v1098 = vmul.f32 %v986, %v1082
      %v1099 = vmul.f32 %v987, %v1083
      %v1100 = vmul.f32 %v988, %v1084
      %v1101 = vmul.f32 %v989, %v1085
      %v1102 = vmul.f32 %v990, %v1086
      %v1103 = vmul.f32 %v991, %v1087
      %v1104 = vmul.f32 %v992, %v1088
      %v1105 = vmul.f32 %v993, %v1089
      %v1106 = vmul.f32 %v994, %v1090
      %v1107 = vmul.f32 %v995, %v1091
      %v1108 = vlaneseq
      %v1109 = vshrl.u32 %v1108, 7
      %v1110 = vsub.s32 4, %v1109
      %v1111 = vrot.slane %v292, %v1110
      %v1112 = vmul.f32 %v1092, %v1111
      %v1113 = vmul.f32 %v1093, %v1111
      %v1114 = vmul.f32 %v1094, %v1111
      %v1115 = vmul.f32 %v1095, %v1111
      %v1116 = vmul.f32 %v1096, %v1111
      %v1117 = vmul.f32 %v1097, %v1111
      %v1118 = vmul.f32 %v1098, %v1111
      %v1119 = vmul.f32 %v1099, %v1111
      %v1120 = vmul.f32 %v1100, %v1111
      %v1121 = vmul.f32 %v1101, %v1111
      %v1122 = vmul.f32 %v1102, %v1111
      %v1123 = vmul.f32 %v1103, %v1111
      %v1124 = vmul.f32 %v1104, %v1111
      %v1125 = vmul.f32 %v1105, %v1111
      %v1126 = vmul.f32 %v1106, %v1111
      %v1127 = vmul.f32 %v1107, %v1111
      %v1128 = vlaneseq
      %v1129 = vshrl.u32 %v1128, 7
      %v1130 = vsub.s32 5, %v1129
      %v1131 = vrot.slane %v292, %v1130
      %v1132 = vadd.f32 %v1112, %v1131
      %v1133 = vadd.f32 %v1113, %v1131
      %v1134 = vadd.f32 %v1114, %v1131
      %v1135 = vadd.f32 %v1115, %v1131
      %v1136 = vadd.f32 %v1116, %v1131
      %v1137 = vadd.f32 %v1117, %v1131
      %v1138 = vadd.f32 %v1118, %v1131
      %v1139 = vadd.f32 %v1119, %v1131
      %v1140 = vadd.f32 %v1120, %v1131
      %v1141 = vadd.f32 %v1121, %v1131
      %v1142 = vadd.f32 %v1122, %v1131
      %v1143 = vadd.f32 %v1123, %v1131
      %v1144 = vadd.f32 %v1124, %v1131
      %v1145 = vadd.f32 %v1125, %v1131
      %v1146 = vadd.f32 %v1126, %v1131
      %v1147 = vadd.f32 %v1127, %v1131
      %v1148 = vpack.c.bf16 %v1133, %v1132
      %v1149 = vpack.c.bf16 %v1135, %v1134
      %v1150 = vpack.c.bf16 %v1137, %v1136
      %v1151 = vpack.c.bf16 %v1139, %v1138
      %v1152 = vpack.c.bf16 %v1141, %v1140
      %v1153 = vpack.c.bf16 %v1143, %v1142
      %v1154 = vpack.c.bf16 %v1145, %v1144
      %v1155 = vpack.c.bf16 %v1147, %v1146
      %v1156 = vlaneseq
      %v1157 = vshrl.u32 %v1156, 7
      %v1158 = vsub.s32 6, %v1157
      %v1159 = vrot.slane %v292, %v1158
      %v1176 = vunpack.c.l.b16 %v276
      %v1177 = vunpack.c.l.b16 %v277
      %v1178 = vunpack.c.l.b16 %v278
      %v1179 = vunpack.c.l.b16 %v279
      %v1180 = vunpack.c.l.b16 %v280
      %v1181 = vunpack.c.l.b16 %v281
      %v1182 = vunpack.c.l.b16 %v282
      %v1183 = vunpack.c.l.b16 %v283
      %v1184 = vunpack.c.l.b16 %v284
      %v1185 = vunpack.c.l.b16 %v285
      %v1186 = vunpack.c.l.b16 %v286
      %v1187 = vunpack.c.l.b16 %v287
      %v1188 = vunpack.c.l.b16 %v288
      %v1189 = vunpack.c.l.b16 %v289
      %v1190 = vunpack.c.l.b16 %v290
      %v1191 = vunpack.c.l.b16 %v291
      %v1192 = vpack.c.b16 %v1177, %v1176
      %v1193 = vpack.c.b16 %v1179, %v1178
      %v1194 = vpack.c.b16 %v1181, %v1180
      %v1195 = vpack.c.b16 %v1183, %v1182
      %v1196 = vpack.c.b16 %v1185, %v1184
      %v1197 = vpack.c.b16 %v1187, %v1186
      %v1198 = vpack.c.b16 %v1189, %v1188
      %v1199 = vpack.c.b16 %v1191, %v1190
      %1208 = vmatprep.subr.bf16.mxu0 0
      %1209 = vmatpush1.bf16.msra.mxu0 %v1192
      %1210 = vmatprep.subr.bf16.mxu0 0
      %1211 = vmatpush1.bf16.msra.mxu0 %v1193
      %1212 = vmatprep.subr.bf16.mxu0 0
      %1213 = vmatpush1.bf16.msra.mxu0 %v1194
      %1214 = vmatprep.subr.bf16.mxu0 0
      %1215 = vmatpush1.bf16.msra.mxu0 %v1195
      %1216 = vmatprep.subr.bf16.mxu0 0
      %1217 = vmatpush1.bf16.msra.mxu0 %v1196
      %1218 = vmatprep.subr.bf16.mxu0 0
      %1219 = vmatpush1.bf16.msra.mxu0 %v1197
      %1220 = vmatprep.subr.bf16.mxu0 0
      %1221 = vmatpush1.bf16.msra.mxu0 %v1198
      %1222 = vmatprep.subr.bf16.mxu0 0
      %1223 = vmatpush1.bf16.msra.mxu0 %v1199
      %1224 = vmatprep.subr.bf16.mxu0 0
      %1225 = vmatpush1.bf16.msra.mxu0 0
      %1226 = vmatprep.subr.bf16.mxu0 0
      %1227 = vmatpush1.bf16.msra.mxu0 0
      %1228 = vmatprep.subr.bf16.mxu0 0
      %1229 = vmatpush1.bf16.msra.mxu0 0
      %1230 = vmatprep.subr.bf16.mxu0 0
      %1231 = vmatpush1.bf16.msra.mxu0 0
      %1232 = vmatprep.subr.bf16.mxu0 0
      %1233 = vmatpush1.bf16.msra.mxu0 0
      %1234 = vmatprep.subr.bf16.mxu0 0
      %1235 = vmatpush1.bf16.msra.mxu0 0
      %1236 = vmatprep.subr.bf16.mxu0 0
      %1237 = vmatpush1.bf16.msra.mxu0 0
      %1238 = vmatprep.subr.bf16.mxu0 0
      %1239 = vmatpush1.bf16.msra.mxu0 0
      %1240 = vmatprep.mubr.bf16.mxu0 0
      %1241 = vmatmul.mubr.bf16.gmra.mrb[0].mxu0 %v1148
      %v1242 = vpop.f32.mrb[0].mxu0
      %v1243 = vadd.f32 %v1159, %v1242
      %v1244 = vpop.f32.mrb[0].mxu0
      %v1245 = vpop.f32.mrb[0].mxu0
      %v1246 = vadd.f32 %v1159, %v1245
      %v1247 = vpop.f32.mrb[0].mxu0
      %1248 = vmatprep.mubr.bf16.mxu0 0
      %1249 = vmatmul.mubr.bf16.gmra.mrb[0].mxu0 %v1149
      %v1250 = vpop.f32.mrb[0].mxu0
      %v1251 = vadd.f32 %v1159, %v1250
      %v1252 = vpop.f32.mrb[0].mxu0
      %v1253 = vpop.f32.mrb[0].mxu0
      %v1254 = vadd.f32 %v1159, %v1253
      %v1255 = vpop.f32.mrb[0].mxu0
      %1256 = vmatprep.mubr.bf16.mxu0 0
      %1257 = vmatmul.mubr.bf16.gmra.mrb[0].mxu0 %v1150
      %v1258 = vpop.f32.mrb[0].mxu0
      %v1259 = vadd.f32 %v1159, %v1258
      %v1260 = vpop.f32.mrb[0].mxu0
      %v1261 = vpop.f32.mrb[0].mxu0
      %v1262 = vadd.f32 %v1159, %v1261
      %v1263 = vpop.f32.mrb[0].mxu0
      %1264 = vmatprep.mubr.bf16.mxu0 0
      %1265 = vmatmul.mubr.bf16.gmra.mrb[0].mxu0 %v1151
      %v1266 = vpop.f32.mrb[0].mxu0
      %v1267 = vadd.f32 %v1159, %v1266
      %v1268 = vpop.f32.mrb[0].mxu0
      %v1269 = vpop.f32.mrb[0].mxu0
      %v1270 = vadd.f32 %v1159, %v1269
      %v1271 = vpop.f32.mrb[0].mxu0
      %1272 = vmatprep.mubr.bf16.mxu0 0
      %1273 = vmatmul.mubr.bf16.gmra.mrb[0].mxu0 %v1152
      %v1274 = vpop.f32.mrb[0].mxu0
      %v1275 = vadd.f32 %v1159, %v1274
      %v1276 = vpop.f32.mrb[0].mxu0
      %v1277 = vpop.f32.mrb[0].mxu0
      %v1278 = vadd.f32 %v1159, %v1277
      %v1279 = vpop.f32.mrb[0].mxu0
      %1280 = vmatprep.mubr.bf16.mxu0 0
      %1281 = vmatmul.mubr.bf16.gmra.mrb[0].mxu0 %v1153
      %v1282 = vpop.f32.mrb[0].mxu0
      %v1283 = vadd.f32 %v1159, %v1282
      %v1284 = vpop.f32.mrb[0].mxu0
      %v1285 = vpop.f32.mrb[0].mxu0
      %v1286 = vadd.f32 %v1159, %v1285
      %v1287 = vpop.f32.mrb[0].mxu0
      %1288 = vmatprep.mubr.bf16.mxu0 0
      %1289 = vmatmul.mubr.bf16.gmra.mrb[0].mxu0 %v1154
      %v1290 = vpop.f32.mrb[0].mxu0
      %v1291 = vadd.f32 %v1159, %v1290
      %v1292 = vpop.f32.mrb[0].mxu0
      %v1293 = vpop.f32.mrb[0].mxu0
      %v1294 = vadd.f32 %v1159, %v1293
      %v1295 = vpop.f32.mrb[0].mxu0
      %1296 = vmatprep.mubr.bf16.mxu0 0
      %1297 = vmatmul.mubr.bf16.gmra.mrb[0].mxu0 %v1155
      %v1298 = vpop.f32.mrb[0].mxu0
      %v1299 = vadd.f32 %v1159, %v1298
      %v1300 = vpop.f32.mrb[0].mxu0
      %v1301 = vpop.f32.mrb[0].mxu0
      %v1302 = vadd.f32 %v1159, %v1301
      %v1303 = vpop.f32.mrb[0].mxu0
      %1304 = vdwg.mxu0
      %v1305 = vadd.f32 %v243, %v1243
      %v1306 = vadd.f32 %v244, %v1246
      %v1307 = vadd.f32 %v245, %v1251
      %v1308 = vadd.f32 %v246, %v1254
      %v1309 = vadd.f32 %v247, %v1259
      %v1310 = vadd.f32 %v248, %v1262
      %v1311 = vadd.f32 %v249, %v1267
      %v1312 = vadd.f32 %v250, %v1270
      %v1313 = vadd.f32 %v251, %v1275
      %v1314 = vadd.f32 %v252, %v1278
      %v1315 = vadd.f32 %v253, %v1283
      %v1316 = vadd.f32 %v254, %v1286
      %v1317 = vadd.f32 %v255, %v1291
      %v1318 = vadd.f32 %v256, %v1294
      %v1319 = vadd.f32 %v257, %v1299
      %v1320 = vadd.f32 %v258, %v1302
      %vm1321 = vcmask 31744
      %1322 = vst.msk [vmem:[%s234] sm:$0xff] %vm1321, %v1305
      %1323 = vst.msk [vmem:[%s234 + $0x8] sm:$0xff] %vm1321, %v1306
      %1324 = vst.msk [vmem:[%s234 + $0x10] sm:$0xff] %vm1321, %v1307
      %1325 = vst.msk [vmem:[%s234 + $0x18] sm:$0xff] %vm1321, %v1308
      %1326 = vst.msk [vmem:[%s234 + $0x20] sm:$0xff] %vm1321, %v1309
      %1327 = vst.msk [vmem:[%s234 + $0x28] sm:$0xff] %vm1321, %v1310
      %1328 = vst.msk [vmem:[%s234 + $0x30] sm:$0xff] %vm1321, %v1311
      %1329 = vst.msk [vmem:[%s234 + $0x38] sm:$0xff] %vm1321, %v1312
      %1330 = vst.msk [vmem:[%s234 + $0x40] sm:$0xff] %vm1321, %v1313
      %1331 = vst.msk [vmem:[%s234 + $0x48] sm:$0xff] %vm1321, %v1314
      %1332 = vst.msk [vmem:[%s234 + $0x50] sm:$0xff] %vm1321, %v1315
      %1333 = vst.msk [vmem:[%s234 + $0x58] sm:$0xff] %vm1321, %v1316
      %1334 = vst.msk [vmem:[%s234 + $0x60] sm:$0xff] %vm1321, %v1317
      %1335 = vst.msk [vmem:[%s234 + $0x68] sm:$0xff] %vm1321, %v1318
      %1336 = vst.msk [vmem:[%s234 + $0x70] sm:$0xff] %vm1321, %v1319
      %1337 = vst.msk [vmem:[%s234 + $0x78] sm:$0xff] %vm1321, %v1320
      %v1338 = vsub.f32 0.0, %v1243
      %v1339 = vsub.f32 0.0, %v1246
      %v1340 = vsub.f32 0.0, %v1251
      %v1341 = vsub.f32 0.0, %v1254
      %v1342 = vsub.f32 0.0, %v1259
      %v1343 = vsub.f32 0.0, %v1262
      %v1344 = vsub.f32 0.0, %v1267
      %v1345 = vsub.f32 0.0, %v1270
      %v1346 = vsub.f32 0.0, %v1275
      %v1347 = vsub.f32 0.0, %v1278
      %v1348 = vsub.f32 0.0, %v1283
      %v1349 = vsub.f32 0.0, %v1286
      %v1350 = vsub.f32 0.0, %v1291
      %v1351 = vsub.f32 0.0, %v1294
      %v1352 = vsub.f32 0.0, %v1299
      %v1353 = vsub.f32 0.0, %v1302
      %v1354 = vmul.f32 %v1338, 1.442695
      %v1355 = vpow.pop %v1354
      %v1356 = vmul.f32 %v1339, 1.442695
      %v1357 = vpow.pop %v1356
      %v1358 = vmul.f32 %v1340, 1.442695
      %v1359 = vpow.pop %v1358
      %v1360 = vmul.f32 %v1341, 1.442695
      %v1361 = vpow.pop %v1360
      %v1362 = vmul.f32 %v1342, 1.442695
      %v1363 = vpow.pop %v1362
      %v1364 = vmul.f32 %v1343, 1.442695
      %v1365 = vpow.pop %v1364
      %v1366 = vmul.f32 %v1344, 1.442695
      %v1367 = vpow.pop %v1366
      %v1368 = vmul.f32 %v1345, 1.442695
      %v1369 = vpow.pop %v1368
      %v1370 = vmul.f32 %v1346, 1.442695
      %v1371 = vpow.pop %v1370
      %v1372 = vmul.f32 %v1347, 1.442695
      %v1373 = vpow.pop %v1372
      %v1374 = vmul.f32 %v1348, 1.442695
      %v1375 = vpow.pop %v1374
      %v1376 = vmul.f32 %v1349, 1.442695
      %v1377 = vpow.pop %v1376
      %v1378 = vmul.f32 %v1350, 1.442695
      %v1379 = vpow.pop %v1378
      %v1380 = vmul.f32 %v1351, 1.442695
      %v1381 = vpow.pop %v1380
      %v1382 = vmul.f32 %v1352, 1.442695
      %v1383 = vpow.pop %v1382
      %v1384 = vmul.f32 %v1353, 1.442695
      %v1385 = vpow.pop %v1384
      %v1386 = vadd.f32 %v1355, 1.0
      %v1387 = vadd.f32 %v1357, 1.0
      %v1388 = vadd.f32 %v1359, 1.0
      %v1389 = vadd.f32 %v1361, 1.0
      %v1390 = vadd.f32 %v1363, 1.0
      %v1391 = vadd.f32 %v1365, 1.0
      %v1392 = vadd.f32 %v1367, 1.0
      %v1393 = vadd.f32 %v1369, 1.0
      %v1394 = vadd.f32 %v1371, 1.0
      %v1395 = vadd.f32 %v1373, 1.0
      %v1396 = vadd.f32 %v1375, 1.0
      %v1397 = vadd.f32 %v1377, 1.0
      %v1398 = vadd.f32 %v1379, 1.0
      %v1399 = vadd.f32 %v1381, 1.0
      %v1400 = vadd.f32 %v1383, 1.0
      %v1401 = vadd.f32 %v1385, 1.0
      %v1402 = vrcp.pop %v1386
      %v1403 = vmul.f32 1.0, %v1402
      %v1404 = vrcp.pop %v1387
      %v1405 = vmul.f32 1.0, %v1404
      %v1406 = vrcp.pop %v1388
      %v1407 = vmul.f32 1.0, %v1406
      %v1408 = vrcp.pop %v1389
      %v1409 = vmul.f32 1.0, %v1408
      %v1410 = vrcp.pop %v1390
      %v1411 = vmul.f32 1.0, %v1410
      %v1412 = vrcp.pop %v1391
      %v1413 = vmul.f32 1.0, %v1412
      %v1414 = vrcp.pop %v1392
      %v1415 = vmul.f32 1.0, %v1414
      %v1416 = vrcp.pop %v1393
      %v1417 = vmul.f32 1.0, %v1416
      %v1418 = vrcp.pop %v1394
      %v1419 = vmul.f32 1.0, %v1418
      %v1420 = vrcp.pop %v1395
      %v1421 = vmul.f32 1.0, %v1420
      %v1422 = vrcp.pop %v1396
      %v1423 = vmul.f32 1.0, %v1422
      %v1424 = vrcp.pop %v1397
      %v1425 = vmul.f32 1.0, %v1424
      %v1426 = vrcp.pop %v1398
      %v1427 = vmul.f32 1.0, %v1426
      %v1428 = vrcp.pop %v1399
      %v1429 = vmul.f32 1.0, %v1428
      %v1430 = vrcp.pop %v1400
      %v1431 = vmul.f32 1.0, %v1430
      %v1432 = vrcp.pop %v1401
      %v1433 = vmul.f32 1.0, %v1432
      %1450 = vrot.lane.b32.xlu0 %v1403, 124
      %v1451 = vpop.permute.xlu0 %1450
      %1452 = vrot.lane.b32.xlu0 %v1405, 124
      %v1453 = vpop.permute.xlu0 %1452
      %1454 = vrot.lane.b32.xlu0 %v1407, 124
      %v1455 = vpop.permute.xlu0 %1454
      %1456 = vrot.lane.b32.xlu0 %v1409, 124
      %v1457 = vpop.permute.xlu0 %1456
      %1458 = vrot.lane.b32.xlu0 %v1411, 124
      %v1459 = vpop.permute.xlu0 %1458
      %1460 = vrot.lane.b32.xlu0 %v1413, 124
      %v1461 = vpop.permute.xlu0 %1460
      %1462 = vrot.lane.b32.xlu0 %v1415, 124
      %v1463 = vpop.permute.xlu0 %1462
      %1464 = vrot.lane.b32.xlu0 %v1417, 124
      %v1465 = vpop.permute.xlu0 %1464
      %1466 = vrot.lane.b32.xlu0 %v1419, 124
      %v1467 = vpop.permute.xlu0 %1466
      %1468 = vrot.lane.b32.xlu0 %v1421, 124
      %v1469 = vpop.permute.xlu0 %1468
      %1470 = vrot.lane.b32.xlu0 %v1423, 124
      %v1471 = vpop.permute.xlu0 %1470
      %1472 = vrot.lane.b32.xlu0 %v1425, 124
      %v1473 = vpop.permute.xlu0 %1472
      %1474 = vrot.lane.b32.xlu0 %v1427, 124
      %v1475 = vpop.permute.xlu0 %1474
      %1476 = vrot.lane.b32.xlu0 %v1429, 124
      %v1477 = vpop.permute.xlu0 %1476
      %1478 = vrot.lane.b32.xlu0 %v1431, 124
      %v1479 = vpop.permute.xlu0 %1478
      %1480 = vrot.lane.b32.xlu0 %v1433, 124
      %v1481 = vpop.permute.xlu0 %1480
      %vm1498 = vcmask 7168
      %1499 = vst.msk [vmem:[%s240] sm:$0xff] %vm1498, %v1451
      %1500 = vst.msk [vmem:[%s240 + $0x8] sm:$0xff] %vm1498, %v1453
      %1501 = vst.msk [vmem:[%s240 + $0x10] sm:$0xff] %vm1498, %v1455
      %1502 = vst.msk [vmem:[%s240 + $0x18] sm:$0xff] %vm1498, %v1457
      %1503 = vst.msk [vmem:[%s240 + $0x20] sm:$0xff] %vm1498, %v1459
      %1504 = vst.msk [vmem:[%s240 + $0x28] sm:$0xff] %vm1498, %v1461
      %1505 = vst.msk [vmem:[%s240 + $0x30] sm:$0xff] %vm1498, %v1463
      %1506 = vst.msk [vmem:[%s240 + $0x38] sm:$0xff] %vm1498, %v1465
      %1507 = vst.msk [vmem:[%s240 + $0x40] sm:$0xff] %vm1498, %v1467
      %1508 = vst.msk [vmem:[%s240 + $0x48] sm:$0xff] %vm1498, %v1469
      %1509 = vst.msk [vmem:[%s240 + $0x50] sm:$0xff] %vm1498, %v1471
      %1510 = vst.msk [vmem:[%s240 + $0x58] sm:$0xff] %vm1498, %v1473
      %1511 = vst.msk [vmem:[%s240 + $0x60] sm:$0xff] %vm1498, %v1475
      %1512 = vst.msk [vmem:[%s240 + $0x68] sm:$0xff] %vm1498, %v1477
      %1513 = vst.msk [vmem:[%s240 + $0x70] sm:$0xff] %vm1498, %v1479
      %1514 = vst.msk [vmem:[%s240 + $0x78] sm:$0xff] %vm1498, %v1481
      %s1515 = smul.u32 16, %s17
      %p1516 = scmp.lt.s32.totalorder %s1515, 31
      %s1517 = scalar_select %p1516, %s1515, 31
      %s1518 = smul.addr %s1517, 8
      %s1519 = scalar_lea.vmem %s4, %s1518
      %s1520 = smul.u32 16, %s17
      %p1521 = scmp.lt.s32.totalorder %s1520, 31
      %s1522 = scalar_select %p1521, %s1520, 31
      %s1523 = smul.addr %s1522, 8
      %s1524 = scalar_lea.vmem %s5, %s1523
      // Predicated region
      $region37: #{one_network_wm_forward.1} parent=35 // pred_check
        %p1525 = pneg %p124
      $region38: #{one_network_wm_forward.1} parent=35 // pred_check_branch
        %1527 = sbr.rel (%p1525) target = $region40
      $region39: #{one_network_wm_forward.1} parent=35 // pred_region
        %s1528 = smul.u32 16, %s17
      $region40: #{one_network_wm_forward.1} parent=35 // pred_fallthru
        _
      // Predicated region
      $region41: #{one_network_wm_forward.1} parent=35 // pred_check
        %p1529 = pneg %p150
      $region42: #{one_network_wm_forward.1} parent=35 // pred_check_branch
        %1531 = sbr.rel (%p1529) target = $region44
      $region43: #{one_network_wm_forward.1} parent=35 // pred_region
        %s1532 = smul.u32 16, %s17
      $region44: #{one_network_wm_forward.1} parent=35 // pred_fallthru
        _
    $region36: #{one_network_wm_forward.1} parent=5 // pred_fallthru
      _
    %p1533 = scmp.le.s32.totalorder 2, %s12
    // Predicated region
    $region45: #{one_network_wm_forward.1} parent=5 // pred_check
      %p1534 = pneg %p1533
    $region46: #{one_network_wm_forward.1} parent=5 // pred_check_branch
      %1536 = sbr.rel (%p1534) target = $region48
    $region47: #{one_network_wm_forward.1} parent=5 // pred_region
      %s1537 = ssub.s32 %s12, 2
      // Predicated region
      $region49: #{one_network_wm_forward.1} parent=47 // pred_check
        %p1538 = pneg %p130
      $region50: #{one_network_wm_forward.1} parent=47 // pred_check_branch
        %1540 = sbr.rel (%p1538) target = $region52
      $region51: #{one_network_wm_forward.1} parent=47 // pred_region
        %s1541 = smul.u32 16, %s18
        %p1542 = scmp.lt.s32.totalorder %s1541, 31
        %s1543 = scalar_select %p1542, %s1541, 31
        %s1544 = smul.addr %s1543, 8
        %s1545 = scalar_lea.vmem %s4, %s1544
      $region52: #{one_network_wm_forward.1} parent=47 // pred_fallthru
        _
      // Predicated region
      $region53: #{one_network_wm_forward.1} parent=47 // pred_check
        %p1546 = pneg %p156
      $region54: #{one_network_wm_forward.1} parent=47 // pred_check_branch
        %1548 = sbr.rel (%p1546) target = $region56
      $region55: #{one_network_wm_forward.1} parent=47 // pred_region
        %s1549 = smul.u32 16, %s18
        %p1550 = scmp.lt.s32.totalorder %s1549, 31
        %s1551 = scalar_select %p1550, %s1549, 31
        %s1552 = smul.addr %s1551, 8
        %s1553 = scalar_lea.vmem %s5, %s1552
      $region56: #{one_network_wm_forward.1} parent=47 // pred_fallthru
        _
    $region48: #{one_network_wm_forward.1} parent=5 // pred_fallthru
      _
  $region6: #{one_network_wm_forward.1} parent=0 // loop_footer
    %s16 = sadd.s32 1, %s12
  $region7: #{one_network_wm_forward.1} parent=0 // loop_footer_branch
    %11 = sbr.rel target = $region3
  $region8: #{one_network_wm_forward.1} parent=0 // loop_exit
    _

</llo_original>
